<compile_context>
chip_gen: v7x
topology: tpu7x:2x2x1
jax: 0.10.0
libtpu: 0.0.40
codegen_flags: <defaults>
</compile_context>

<pallas_src>
import jax
import jax.numpy as jnp
from jax.experimental import pallas as pl
from jax.experimental.pallas import tpu as pltpu

IN_DIM = 256
KSIZE = 21
FILTERS = (11, 7, 5, 1)

# Packed head-output column layout (lane offsets):
#   [0, 512):    k0 (11x11) embedded into a flattened 21x21 canvas:
#                filter row i sits at flat positions 21*i .. 21*i+10, rest 0.
#   [512, 561):  k1 flat (7x7 = 49)
#   [561, 586):  k2 flat (5x5 = 25)
#   [586, 587):  k3 (1x1)
#   [587, 640):  zero pad (keeps packed matmul width a multiple of 128)
CANVAS_W = 512            # 4 * 128 lanes, >= 441 = 21*21, vreg multiple
K1_OFF = CANVAS_W
K2_OFF = K1_OFF + 49
K3_OFF = K2_OFF + 25
PACK_W = 640


# ---------------------------------------------------------------------------
# Single fused kernel:
#   matmul (K=256) -> ReLU -> packed-head matmul (w2 pre-fused) ->
#   compose (49 + 25 roll-MACs, split accumulators) -> 1x1 scale ->
#   spatial-sum normalize -> lane-dense [B, 512] store.
# Total working set is a few hundred KB: full-block VMEM residents, no grid.
# ---------------------------------------------------------------------------
def kernel_fused(x_ref, w1_ref, b1_ref, w2p_ref, b2p_ref, o_ref):
    # --- decoder MLP + packed heads: two MXU matmuls -------------------------
    x = x_ref[...]
    h = jnp.dot(x, w1_ref[...], preferred_element_type=jnp.float32) + b1_ref[...]
    h = jnp.maximum(h, 0.0)
    heads = jnp.dot(h, w2p_ref[...], preferred_element_type=jnp.float32) + b2p_ref[...]  # [B, 640]

    canvas = heads[:, 0:CANVAS_W]             # [B, 512]  k0 embedded in 21x21, tail exactly 0
    k1v = heads[:, K1_OFF:K2_OFF]             # [B, 49]
    k2v = heads[:, K2_OFF:K3_OFF]             # [B, 25]
    k3v = heads[:, K3_OFF:K3_OFF + 1]         # [B, 1]

    # --- full conv (k0 * k1): 49 lane-rolls + MACs ---------------------------
    # In flat (stride-21) space a 2-D shift by (p, q) is one roll by 21*p + q.
    # Wrap-around reads only ever hit lanes that are exactly zero (rows/cols
    # >= 11 of the embedded k0 and the 441..511 tail), so the result equals the
    # full 2-D convolution embedded at the canvas origin.
    # 4 independent accumulators break the serial VPU-add chain so adds
    # pipeline behind the XLU rolls.
    accs = [jnp.zeros_like(canvas) for _ in range(4)]
    for p in range(7):
        for q in range(7):
            idx = 7 * p + q
            shift = KSIZE * p + q
            shifted = canvas if shift == 0 else pltpu.roll(canvas, shift, axis=1)
            accs[idx % 4] = accs[idx % 4] + k1v[:, idx:idx + 1] * shifted
    acc1 = (accs[0] + accs[1]) + (accs[2] + accs[3])

    # --- full conv ((k0 * k1) * k2): 25 lane-rolls + MACs --------------------
    accs2 = [jnp.zeros_like(canvas) for _ in range(4)]
    for r in range(5):
        for s in range(5):
            idx = 5 * r + s
            shift = KSIZE * r + s
            shifted = acc1 if shift == 0 else pltpu.roll(acc1, shift, axis=1)
            accs2[idx % 4] = accs2[idx % 4] + k2v[:, idx:idx + 1] * shifted
    acc2 = (accs2[0] + accs2[1]) + (accs2[2] + accs2[3])

    # --- 1x1 filter scale + spatial-sum normalization ------------------------
    # Lanes >= 441 of acc2 are exactly zero, so the full-width reduce equals
    # the 21x21 spatial sum.  (No epsilon: same behavior as the torch chain.)
    K = acc2 * k3v                            # [B, 512]
    denom = jnp.sum(K, axis=1, keepdims=True)
    inv = pl.reciprocal(denom, approx=True)
    inv = inv * (2.0 - denom * inv)           # one Newton step: ~exact f32 reciprocal
    o_ref[...] = K * inv                      # lane-dense 512-wide store (tail stays 0)


# ---------------------------------------------------------------------------
# Init-time packing (hoisted out of the per-call path):
#   - pack the four head Linear layers into one lane-dense [16, 640] matrix
#     (exact column re-indexing, no arithmetic change),
#   - fuse the second MLP matmul into it: W2P = w2 @ wp, B2P = b2 @ wp + bp.
# ---------------------------------------------------------------------------
def _embed_k0(w):
    """[R, 121] (11x11 row-major) -> [R, 512]: row i at flat 21*i .. 21*i+10."""
    R = w.shape[0]
    w3 = jnp.pad(w.reshape(R, 11, 11), ((0, 0), (0, 0), (0, KSIZE - 11)))
    flat = w3.reshape(R, 11 * KSIZE)                       # [R, 231]
    return jnp.pad(flat, ((0, 0), (0, CANVAS_W - 11 * KSIZE)))


def pack_params(params):
    wd, bd = params['wd'], params['bd']
    pad_w = PACK_W - (CANVAS_W + 49 + 25 + 1)
    wp = jnp.concatenate(
        [_embed_k0(wd[0]), wd[1], wd[2], wd[3],
         jnp.zeros((wd[0].shape[0], pad_w), jnp.float32)], axis=1)      # [16, 640]
    bp = jnp.concatenate(
        [_embed_k0(bd[0]), bd[1], bd[2], bd[3],
         jnp.zeros((1, pad_w), jnp.float32)], axis=1)                   # [1, 640]
    hp = jax.lax.Precision.HIGHEST
    w2p = jnp.dot(params['w2'], wp, precision=hp)                       # [64, 640]
    b2p = jnp.dot(params['b2'], wp, precision=hp) + bp                  # [1, 640]
    return {'w1': params['w1'], 'b1': params['b1'], 'w2p': w2p, 'b2p': b2p}


@jax.jit
def kernel_forward(degrade, packed):
    B = degrade.shape[0]
    vmem = pltpu.MemorySpace.VMEM
    out_canvas = pl.pallas_call(
        kernel_fused,
        out_shape=jax.ShapeDtypeStruct((B, CANVAS_W), jnp.float32),
        in_specs=[pl.BlockSpec(memory_space=vmem)] * 5,
        out_specs=pl.BlockSpec(memory_space=vmem),
    )(degrade, packed['w1'], packed['b1'], packed['w2p'], packed['b2p'])
    # Crop the lane-dense canvas and reshape to NCHW (wrapper-side layout plumbing).
    return out_canvas[:, :KSIZE * KSIZE].reshape(B, 1, KSIZE, KSIZE)


# ---------------------------------------------------------------------------
# Deterministic parameter init (xavier-uniform weights, constant biases)
# ---------------------------------------------------------------------------
def xavier_uniform(key, fan_in, fan_out):
    limit = (6.0 / (fan_in + fan_out)) ** 0.5
    return jax.random.uniform(key, (fan_in, fan_out), jnp.float32, -limit, limit)


def init_params(key):
    ks = jax.random.split(key, 6)
    return {
        'w1': xavier_uniform(ks[0], IN_DIM, IN_DIM // 4),
        'b1': jnp.full((1, IN_DIM // 4), 0.01, jnp.float32),
        'w2': xavier_uniform(ks[1], IN_DIM // 4, IN_DIM // 16),
        'b2': jnp.full((1, IN_DIM // 16), 0.01, jnp.float32),
        'wd': [xavier_uniform(ks[2 + i], IN_DIM // 16, f * f) for i, f in enumerate(FILTERS)],
        'bd': [jnp.full((1, f * f), 0.1, jnp.float32) for f in FILTERS],
    }


# ---------------------------------------------------------------------------
# Pure-JAX reference (mirrors the torch semantics) for a correctness check
# ---------------------------------------------------------------------------
def ref_full_conv(a, b):
    B, Ha, Wa = a.shape
    _, Hb, Wb = b.shape
    out = jnp.zeros((B, Ha + Hb - 1, Wa + Wb - 1), jnp.float32)
    for p in range(Hb):
        for q in range(Wb):
            out = out.at[:, p:p + Ha, q:q + Wa].add(a * b[:, p:p + 1, q:q + 1])
    return out


def reference_forward(degrade, params):
    B = degrade.shape[0]
    hp = jax.lax.Precision.HIGHEST
    h = jnp.maximum(jnp.dot(degrade, params['w1'], precision=hp) + params['b1'], 0.0)
    z = jnp.dot(h, params['w2'], precision=hp) + params['b2']
    ks = []
    for i, f in enumerate(FILTERS):
        ks.append((jnp.dot(z, params['wd'][i], precision=hp) + params['bd'][i]).reshape(B, f, f))
    K = ref_full_conv(ref_full_conv(ks[0], ks[1]), ks[2]) * ks[3].reshape(B, 1, 1)
    K = K / jnp.sum(K, axis=(1, 2), keepdims=True)
    return K.reshape(B, 1, KSIZE, KSIZE)


if __name__ == "__main__":
    B = 2
    root = jax.random.PRNGKey(0)
    pkey, xkey = jax.random.split(root)
    params = init_params(pkey)
    packed = jax.block_until_ready(pack_params(params))   # packing hoisted to init
    degrade = jax.random.normal(xkey, (B, IN_DIM), jnp.float32)

    out = kernel_forward(degrade, packed)
    out = jax.block_until_ready(out)

    assert out.shape == (B, 1, KSIZE, KSIZE)
    ref = reference_forward(degrade, params)
    if not bool(jnp.allclose(out, ref, rtol=2e-2, atol=1e-4)):
        raise AssertionError("Pallas output mismatches reference, max abs diff = "
                             f"{float(jnp.max(jnp.abs(out - ref)))}")
    print("KERNEL_OK")
</pallas_src>

<mosaic_0001>
module attributes {stable_mosaic.version = 11 : i64} {
  func.func @kernel_fused(%arg0: memref<2x256xf32, #tpu.memory_space<vmem>>, %arg1: memref<256x64xf32, #tpu.memory_space<vmem>>, %arg2: memref<1x64xf32, #tpu.memory_space<vmem>>, %arg3: memref<64x640xf32, #tpu.memory_space<vmem>>, %arg4: memref<1x640xf32, #tpu.memory_space<vmem>>, %arg5: memref<2x512xf32, #tpu.memory_space<vmem>>) attributes {dimension_semantics = [], scalar_prefetch = 0 : i64, scratch_operands = 0 : i64, tpu.core_type = #tpu.core_type<tc>} {
    %c0 = arith.constant 0 : index
    %c0_0 = arith.constant 0 : index
    %0 = vector.load %arg0[%c0, %c0_0] : memref<2x256xf32, #tpu.memory_space<vmem>>, vector<2x256xf32>
    %c0_1 = arith.constant 0 : index
    %c0_2 = arith.constant 0 : index
    %1 = vector.load %arg1[%c0_1, %c0_2] : memref<256x64xf32, #tpu.memory_space<vmem>>, vector<256x64xf32>
    %cst = arith.constant dense<0.000000e+00> : vector<2x64xf32>
    %2 = tpu.matmul %0, %1, %cst {dimension_numbers = #tpu.dot_dimension_numbers<[1], [0], [0], [1], [0, 0, 1, 1], [], []>} : vector<2x256xf32>, vector<256x64xf32>, vector<2x64xf32> -> vector<2x64xf32>
    %c0_3 = arith.constant 0 : index
    %c0_4 = arith.constant 0 : index
    %3 = vector.load %arg2[%c0_3, %c0_4] : memref<1x64xf32, #tpu.memory_space<vmem>>, vector<1x64xf32>
    %4 = vector.broadcast %3 : vector<1x64xf32> to vector<2x64xf32>
    %5 = arith.addf %2, %4 : vector<2x64xf32>
    %cst_5 = arith.constant 0.000000e+00 : f32
    %6 = vector.broadcast %cst_5 : f32 to vector<2x64xf32>
    %7 = arith.maximumf %5, %6 : vector<2x64xf32>
    %c0_6 = arith.constant 0 : index
    %c0_7 = arith.constant 0 : index
    %8 = vector.load %arg3[%c0_6, %c0_7] : memref<64x640xf32, #tpu.memory_space<vmem>>, vector<64x640xf32>
    %cst_8 = arith.constant dense<0.000000e+00> : vector<2x640xf32>
    %9 = tpu.matmul %7, %8, %cst_8 {dimension_numbers = #tpu.dot_dimension_numbers<[1], [0], [0], [1], [0, 0, 1, 1], [], []>} : vector<2x64xf32>, vector<64x640xf32>, vector<2x640xf32> -> vector<2x640xf32>
    %c0_9 = arith.constant 0 : index
    %c0_10 = arith.constant 0 : index
    %10 = vector.load %arg4[%c0_9, %c0_10] : memref<1x640xf32, #tpu.memory_space<vmem>>, vector<1x640xf32>
    %11 = vector.broadcast %10 : vector<1x640xf32> to vector<2x640xf32>
    %12 = arith.addf %9, %11 : vector<2x640xf32>
    %13 = vector.extract_strided_slice %12 {offsets = [0, 0], sizes = [2, 512], strides = [1, 1]} : vector<2x640xf32> to vector<2x512xf32>
    %14 = vector.extract_strided_slice %12 {offsets = [0, 512], sizes = [2, 49], strides = [1, 1]} : vector<2x640xf32> to vector<2x49xf32>
    %15 = vector.extract_strided_slice %12 {offsets = [0, 561], sizes = [2, 25], strides = [1, 1]} : vector<2x640xf32> to vector<2x25xf32>
    %16 = vector.extract_strided_slice %12 {offsets = [0, 586], sizes = [2, 1], strides = [1, 1]} : vector<2x640xf32> to vector<2x1xf32>
    %cst_11 = arith.constant 0.000000e+00 : f32
    %17 = vector.broadcast %cst_11 : f32 to vector<2x512xf32>
    %cst_12 = arith.constant 0.000000e+00 : f32
    %18 = vector.broadcast %cst_12 : f32 to vector<2x512xf32>
    %cst_13 = arith.constant 0.000000e+00 : f32
    %19 = vector.broadcast %cst_13 : f32 to vector<2x512xf32>
    %cst_14 = arith.constant 0.000000e+00 : f32
    %20 = vector.broadcast %cst_14 : f32 to vector<2x512xf32>
    %21 = vector.extract_strided_slice %14 {offsets = [0, 0], sizes = [2, 1], strides = [1, 1]} : vector<2x49xf32> to vector<2x1xf32>
    %22 = vector.broadcast %21 : vector<2x1xf32> to vector<2x512xf32>
    %23 = arith.mulf %22, %13 : vector<2x512xf32>
    %24 = arith.addf %17, %23 : vector<2x512xf32>
    %c1_i32 = arith.constant 1 : i32
    %25 = tpu.dynamic_rotate %13 by %c1_i32 dim 1 : vector<2x512xf32>, i32 -> vector<2x512xf32>
    %26 = vector.extract_strided_slice %14 {offsets = [0, 1], sizes = [2, 1], strides = [1, 1]} : vector<2x49xf32> to vector<2x1xf32>
    %27 = vector.broadcast %26 : vector<2x1xf32> to vector<2x512xf32>
    %28 = arith.mulf %27, %25 : vector<2x512xf32>
    %29 = arith.addf %18, %28 : vector<2x512xf32>
    %c2_i32 = arith.constant 2 : i32
    %30 = tpu.dynamic_rotate %13 by %c2_i32 dim 1 : vector<2x512xf32>, i32 -> vector<2x512xf32>
    %31 = vector.extract_strided_slice %14 {offsets = [0, 2], sizes = [2, 1], strides = [1, 1]} : vector<2x49xf32> to vector<2x1xf32>
    %32 = vector.broadcast %31 : vector<2x1xf32> to vector<2x512xf32>
    %33 = arith.mulf %32, %30 : vector<2x512xf32>
    %34 = arith.addf %19, %33 : vector<2x512xf32>
    %c3_i32 = arith.constant 3 : i32
    %35 = tpu.dynamic_rotate %13 by %c3_i32 dim 1 : vector<2x512xf32>, i32 -> vector<2x512xf32>
    %36 = vector.extract_strided_slice %14 {offsets = [0, 3], sizes = [2, 1], strides = [1, 1]} : vector<2x49xf32> to vector<2x1xf32>
    %37 = vector.broadcast %36 : vector<2x1xf32> to vector<2x512xf32>
    %38 = arith.mulf %37, %35 : vector<2x512xf32>
    %39 = arith.addf %20, %38 : vector<2x512xf32>
    %c4_i32 = arith.constant 4 : i32
    %40 = tpu.dynamic_rotate %13 by %c4_i32 dim 1 : vector<2x512xf32>, i32 -> vector<2x512xf32>
    %41 = vector.extract_strided_slice %14 {offsets = [0, 4], sizes = [2, 1], strides = [1, 1]} : vector<2x49xf32> to vector<2x1xf32>
    %42 = vector.broadcast %41 : vector<2x1xf32> to vector<2x512xf32>
    %43 = arith.mulf %42, %40 : vector<2x512xf32>
    %44 = arith.addf %24, %43 : vector<2x512xf32>
    %c5_i32 = arith.constant 5 : i32
    %45 = tpu.dynamic_rotate %13 by %c5_i32 dim 1 : vector<2x512xf32>, i32 -> vector<2x512xf32>
    %46 = vector.extract_strided_slice %14 {offsets = [0, 5], sizes = [2, 1], strides = [1, 1]} : vector<2x49xf32> to vector<2x1xf32>
    %47 = vector.broadcast %46 : vector<2x1xf32> to vector<2x512xf32>
    %48 = arith.mulf %47, %45 : vector<2x512xf32>
    %49 = arith.addf %29, %48 : vector<2x512xf32>
    %c6_i32 = arith.constant 6 : i32
    %50 = tpu.dynamic_rotate %13 by %c6_i32 dim 1 : vector<2x512xf32>, i32 -> vector<2x512xf32>
    %51 = vector.extract_strided_slice %14 {offsets = [0, 6], sizes = [2, 1], strides = [1, 1]} : vector<2x49xf32> to vector<2x1xf32>
    %52 = vector.broadcast %51 : vector<2x1xf32> to vector<2x512xf32>
    %53 = arith.mulf %52, %50 : vector<2x512xf32>
    %54 = arith.addf %34, %53 : vector<2x512xf32>
    %c21_i32 = arith.constant 21 : i32
    %55 = tpu.dynamic_rotate %13 by %c21_i32 dim 1 : vector<2x512xf32>, i32 -> vector<2x512xf32>
    %56 = vector.extract_strided_slice %14 {offsets = [0, 7], sizes = [2, 1], strides = [1, 1]} : vector<2x49xf32> to vector<2x1xf32>
    %57 = vector.broadcast %56 : vector<2x1xf32> to vector<2x512xf32>
    %58 = arith.mulf %57, %55 : vector<2x512xf32>
    %59 = arith.addf %39, %58 : vector<2x512xf32>
    %c22_i32 = arith.constant 22 : i32
    %60 = tpu.dynamic_rotate %13 by %c22_i32 dim 1 : vector<2x512xf32>, i32 -> vector<2x512xf32>
    %61 = vector.extract_strided_slice %14 {offsets = [0, 8], sizes = [2, 1], strides = [1, 1]} : vector<2x49xf32> to vector<2x1xf32>
    %62 = vector.broadcast %61 : vector<2x1xf32> to vector<2x512xf32>
    %63 = arith.mulf %62, %60 : vector<2x512xf32>
    %64 = arith.addf %44, %63 : vector<2x512xf32>
    %c23_i32 = arith.constant 23 : i32
    %65 = tpu.dynamic_rotate %13 by %c23_i32 dim 1 : vector<2x512xf32>, i32 -> vector<2x512xf32>
    %66 = vector.extract_strided_slice %14 {offsets = [0, 9], sizes = [2, 1], strides = [1, 1]} : vector<2x49xf32> to vector<2x1xf32>
    %67 = vector.broadcast %66 : vector<2x1xf32> to vector<2x512xf32>
    %68 = arith.mulf %67, %65 : vector<2x512xf32>
    %69 = arith.addf %49, %68 : vector<2x512xf32>
    %c24_i32 = arith.constant 24 : i32
    %70 = tpu.dynamic_rotate %13 by %c24_i32 dim 1 : vector<2x512xf32>, i32 -> vector<2x512xf32>
    %71 = vector.extract_strided_slice %14 {offsets = [0, 10], sizes = [2, 1], strides = [1, 1]} : vector<2x49xf32> to vector<2x1xf32>
    %72 = vector.broadcast %71 : vector<2x1xf32> to vector<2x512xf32>
    %73 = arith.mulf %72, %70 : vector<2x512xf32>
    %74 = arith.addf %54, %73 : vector<2x512xf32>
    %c25_i32 = arith.constant 25 : i32
    %75 = tpu.dynamic_rotate %13 by %c25_i32 dim 1 : vector<2x512xf32>, i32 -> vector<2x512xf32>
    %76 = vector.extract_strided_slice %14 {offsets = [0, 11], sizes = [2, 1], strides = [1, 1]} : vector<2x49xf32> to vector<2x1xf32>
    %77 = vector.broadcast %76 : vector<2x1xf32> to vector<2x512xf32>
    %78 = arith.mulf %77, %75 : vector<2x512xf32>
    %79 = arith.addf %59, %78 : vector<2x512xf32>
    %c26_i32 = arith.constant 26 : i32
    %80 = tpu.dynamic_rotate %13 by %c26_i32 dim 1 : vector<2x512xf32>, i32 -> vector<2x512xf32>
    %81 = vector.extract_strided_slice %14 {offsets = [0, 12], sizes = [2, 1], strides = [1, 1]} : vector<2x49xf32> to vector<2x1xf32>
    %82 = vector.broadcast %81 : vector<2x1xf32> to vector<2x512xf32>
    %83 = arith.mulf %82, %80 : vector<2x512xf32>
    %84 = arith.addf %64, %83 : vector<2x512xf32>
    %c27_i32 = arith.constant 27 : i32
    %85 = tpu.dynamic_rotate %13 by %c27_i32 dim 1 : vector<2x512xf32>, i32 -> vector<2x512xf32>
    %86 = vector.extract_strided_slice %14 {offsets = [0, 13], sizes = [2, 1], strides = [1, 1]} : vector<2x49xf32> to vector<2x1xf32>
    %87 = vector.broadcast %86 : vector<2x1xf32> to vector<2x512xf32>
    %88 = arith.mulf %87, %85 : vector<2x512xf32>
    %89 = arith.addf %69, %88 : vector<2x512xf32>
    %c42_i32 = arith.constant 42 : i32
    %90 = tpu.dynamic_rotate %13 by %c42_i32 dim 1 : vector<2x512xf32>, i32 -> vector<2x512xf32>
    %91 = vector.extract_strided_slice %14 {offsets = [0, 14], sizes = [2, 1], strides = [1, 1]} : vector<2x49xf32> to vector<2x1xf32>
    %92 = vector.broadcast %91 : vector<2x1xf32> to vector<2x512xf32>
    %93 = arith.mulf %92, %90 : vector<2x512xf32>
    %94 = arith.addf %74, %93 : vector<2x512xf32>
    %c43_i32 = arith.constant 43 : i32
    %95 = tpu.dynamic_rotate %13 by %c43_i32 dim 1 : vector<2x512xf32>, i32 -> vector<2x512xf32>
    %96 = vector.extract_strided_slice %14 {offsets = [0, 15], sizes = [2, 1], strides = [1, 1]} : vector<2x49xf32> to vector<2x1xf32>
    %97 = vector.broadcast %96 : vector<2x1xf32> to vector<2x512xf32>
    %98 = arith.mulf %97, %95 : vector<2x512xf32>
    %99 = arith.addf %79, %98 : vector<2x512xf32>
    %c44_i32 = arith.constant 44 : i32
    %100 = tpu.dynamic_rotate %13 by %c44_i32 dim 1 : vector<2x512xf32>, i32 -> vector<2x512xf32>
    %101 = vector.extract_strided_slice %14 {offsets = [0, 16], sizes = [2, 1], strides = [1, 1]} : vector<2x49xf32> to vector<2x1xf32>
    %102 = vector.broadcast %101 : vector<2x1xf32> to vector<2x512xf32>
    %103 = arith.mulf %102, %100 : vector<2x512xf32>
    %104 = arith.addf %84, %103 : vector<2x512xf32>
    %c45_i32 = arith.constant 45 : i32
    %105 = tpu.dynamic_rotate %13 by %c45_i32 dim 1 : vector<2x512xf32>, i32 -> vector<2x512xf32>
    %106 = vector.extract_strided_slice %14 {offsets = [0, 17], sizes = [2, 1], strides = [1, 1]} : vector<2x49xf32> to vector<2x1xf32>
    %107 = vector.broadcast %106 : vector<2x1xf32> to vector<2x512xf32>
    %108 = arith.mulf %107, %105 : vector<2x512xf32>
    %109 = arith.addf %89, %108 : vector<2x512xf32>
    %c46_i32 = arith.constant 46 : i32
    %110 = tpu.dynamic_rotate %13 by %c46_i32 dim 1 : vector<2x512xf32>, i32 -> vector<2x512xf32>
    %111 = vector.extract_strided_slice %14 {offsets = [0, 18], sizes = [2, 1], strides = [1, 1]} : vector<2x49xf32> to vector<2x1xf32>
    %112 = vector.broadcast %111 : vector<2x1xf32> to vector<2x512xf32>
    %113 = arith.mulf %112, %110 : vector<2x512xf32>
    %114 = arith.addf %94, %113 : vector<2x512xf32>
    %c47_i32 = arith.constant 47 : i32
    %115 = tpu.dynamic_rotate %13 by %c47_i32 dim 1 : vector<2x512xf32>, i32 -> vector<2x512xf32>
    %116 = vector.extract_strided_slice %14 {offsets = [0, 19], sizes = [2, 1], strides = [1, 1]} : vector<2x49xf32> to vector<2x1xf32>
    %117 = vector.broadcast %116 : vector<2x1xf32> to vector<2x512xf32>
    %118 = arith.mulf %117, %115 : vector<2x512xf32>
    %119 = arith.addf %99, %118 : vector<2x512xf32>
    %c48_i32 = arith.constant 48 : i32
    %120 = tpu.dynamic_rotate %13 by %c48_i32 dim 1 : vector<2x512xf32>, i32 -> vector<2x512xf32>
    %121 = vector.extract_strided_slice %14 {offsets = [0, 20], sizes = [2, 1], strides = [1, 1]} : vector<2x49xf32> to vector<2x1xf32>
    %122 = vector.broadcast %121 : vector<2x1xf32> to vector<2x512xf32>
    %123 = arith.mulf %122, %120 : vector<2x512xf32>
    %124 = arith.addf %104, %123 : vector<2x512xf32>
    %c63_i32 = arith.constant 63 : i32
    %125 = tpu.dynamic_rotate %13 by %c63_i32 dim 1 : vector<2x512xf32>, i32 -> vector<2x512xf32>
    %126 = vector.extract_strided_slice %14 {offsets = [0, 21], sizes = [2, 1], strides = [1, 1]} : vector<2x49xf32> to vector<2x1xf32>
    %127 = vector.broadcast %126 : vector<2x1xf32> to vector<2x512xf32>
    %128 = arith.mulf %127, %125 : vector<2x512xf32>
    %129 = arith.addf %109, %128 : vector<2x512xf32>
    %c64_i32 = arith.constant 64 : i32
    %130 = tpu.dynamic_rotate %13 by %c64_i32 dim 1 : vector<2x512xf32>, i32 -> vector<2x512xf32>
    %131 = vector.extract_strided_slice %14 {offsets = [0, 22], sizes = [2, 1], strides = [1, 1]} : vector<2x49xf32> to vector<2x1xf32>
    %132 = vector.broadcast %131 : vector<2x1xf32> to vector<2x512xf32>
    %133 = arith.mulf %132, %130 : vector<2x512xf32>
    %134 = arith.addf %114, %133 : vector<2x512xf32>
    %c65_i32 = arith.constant 65 : i32
    %135 = tpu.dynamic_rotate %13 by %c65_i32 dim 1 : vector<2x512xf32>, i32 -> vector<2x512xf32>
    %136 = vector.extract_strided_slice %14 {offsets = [0, 23], sizes = [2, 1], strides = [1, 1]} : vector<2x49xf32> to vector<2x1xf32>
    %137 = vector.broadcast %136 : vector<2x1xf32> to vector<2x512xf32>
    %138 = arith.mulf %137, %135 : vector<2x512xf32>
    %139 = arith.addf %119, %138 : vector<2x512xf32>
    %c66_i32 = arith.constant 66 : i32
    %140 = tpu.dynamic_rotate %13 by %c66_i32 dim 1 : vector<2x512xf32>, i32 -> vector<2x512xf32>
    %141 = vector.extract_strided_slice %14 {offsets = [0, 24], sizes = [2, 1], strides = [1, 1]} : vector<2x49xf32> to vector<2x1xf32>
    %142 = vector.broadcast %141 : vector<2x1xf32> to vector<2x512xf32>
    %143 = arith.mulf %142, %140 : vector<2x512xf32>
    %144 = arith.addf %124, %143 : vector<2x512xf32>
    %c67_i32 = arith.constant 67 : i32
    %145 = tpu.dynamic_rotate %13 by %c67_i32 dim 1 : vector<2x512xf32>, i32 -> vector<2x512xf32>
    %146 = vector.extract_strided_slice %14 {offsets = [0, 25], sizes = [2, 1], strides = [1, 1]} : vector<2x49xf32> to vector<2x1xf32>
    %147 = vector.broadcast %146 : vector<2x1xf32> to vector<2x512xf32>
    %148 = arith.mulf %147, %145 : vector<2x512xf32>
    %149 = arith.addf %129, %148 : vector<2x512xf32>
    %c68_i32 = arith.constant 68 : i32
    %150 = tpu.dynamic_rotate %13 by %c68_i32 dim 1 : vector<2x512xf32>, i32 -> vector<2x512xf32>
    %151 = vector.extract_strided_slice %14 {offsets = [0, 26], sizes = [2, 1], strides = [1, 1]} : vector<2x49xf32> to vector<2x1xf32>
    %152 = vector.broadcast %151 : vector<2x1xf32> to vector<2x512xf32>
    %153 = arith.mulf %152, %150 : vector<2x512xf32>
    %154 = arith.addf %134, %153 : vector<2x512xf32>
    %c69_i32 = arith.constant 69 : i32
    %155 = tpu.dynamic_rotate %13 by %c69_i32 dim 1 : vector<2x512xf32>, i32 -> vector<2x512xf32>
    %156 = vector.extract_strided_slice %14 {offsets = [0, 27], sizes = [2, 1], strides = [1, 1]} : vector<2x49xf32> to vector<2x1xf32>
    %157 = vector.broadcast %156 : vector<2x1xf32> to vector<2x512xf32>
    %158 = arith.mulf %157, %155 : vector<2x512xf32>
    %159 = arith.addf %139, %158 : vector<2x512xf32>
    %c84_i32 = arith.constant 84 : i32
    %160 = tpu.dynamic_rotate %13 by %c84_i32 dim 1 : vector<2x512xf32>, i32 -> vector<2x512xf32>
    %161 = vector.extract_strided_slice %14 {offsets = [0, 28], sizes = [2, 1], strides = [1, 1]} : vector<2x49xf32> to vector<2x1xf32>
    %162 = vector.broadcast %161 : vector<2x1xf32> to vector<2x512xf32>
    %163 = arith.mulf %162, %160 : vector<2x512xf32>
    %164 = arith.addf %144, %163 : vector<2x512xf32>
    %c85_i32 = arith.constant 85 : i32
    %165 = tpu.dynamic_rotate %13 by %c85_i32 dim 1 : vector<2x512xf32>, i32 -> vector<2x512xf32>
    %166 = vector.extract_strided_slice %14 {offsets = [0, 29], sizes = [2, 1], strides = [1, 1]} : vector<2x49xf32> to vector<2x1xf32>
    %167 = vector.broadcast %166 : vector<2x1xf32> to vector<2x512xf32>
    %168 = arith.mulf %167, %165 : vector<2x512xf32>
    %169 = arith.addf %149, %168 : vector<2x512xf32>
    %c86_i32 = arith.constant 86 : i32
    %170 = tpu.dynamic_rotate %13 by %c86_i32 dim 1 : vector<2x512xf32>, i32 -> vector<2x512xf32>
    %171 = vector.extract_strided_slice %14 {offsets = [0, 30], sizes = [2, 1], strides = [1, 1]} : vector<2x49xf32> to vector<2x1xf32>
    %172 = vector.broadcast %171 : vector<2x1xf32> to vector<2x512xf32>
    %173 = arith.mulf %172, %170 : vector<2x512xf32>
    %174 = arith.addf %154, %173 : vector<2x512xf32>
    %c87_i32 = arith.constant 87 : i32
    %175 = tpu.dynamic_rotate %13 by %c87_i32 dim 1 : vector<2x512xf32>, i32 -> vector<2x512xf32>
    %176 = vector.extract_strided_slice %14 {offsets = [0, 31], sizes = [2, 1], strides = [1, 1]} : vector<2x49xf32> to vector<2x1xf32>
    %177 = vector.broadcast %176 : vector<2x1xf32> to vector<2x512xf32>
    %178 = arith.mulf %177, %175 : vector<2x512xf32>
    %179 = arith.addf %159, %178 : vector<2x512xf32>
    %c88_i32 = arith.constant 88 : i32
    %180 = tpu.dynamic_rotate %13 by %c88_i32 dim 1 : vector<2x512xf32>, i32 -> vector<2x512xf32>
    %181 = vector.extract_strided_slice %14 {offsets = [0, 32], sizes = [2, 1], strides = [1, 1]} : vector<2x49xf32> to vector<2x1xf32>
    %182 = vector.broadcast %181 : vector<2x1xf32> to vector<2x512xf32>
    %183 = arith.mulf %182, %180 : vector<2x512xf32>
    %184 = arith.addf %164, %183 : vector<2x512xf32>
    %c89_i32 = arith.constant 89 : i32
    %185 = tpu.dynamic_rotate %13 by %c89_i32 dim 1 : vector<2x512xf32>, i32 -> vector<2x512xf32>
    %186 = vector.extract_strided_slice %14 {offsets = [0, 33], sizes = [2, 1], strides = [1, 1]} : vector<2x49xf32> to vector<2x1xf32>
    %187 = vector.broadcast %186 : vector<2x1xf32> to vector<2x512xf32>
    %188 = arith.mulf %187, %185 : vector<2x512xf32>
    %189 = arith.addf %169, %188 : vector<2x512xf32>
    %c90_i32 = arith.constant 90 : i32
    %190 = tpu.dynamic_rotate %13 by %c90_i32 dim 1 : vector<2x512xf32>, i32 -> vector<2x512xf32>
    %191 = vector.extract_strided_slice %14 {offsets = [0, 34], sizes = [2, 1], strides = [1, 1]} : vector<2x49xf32> to vector<2x1xf32>
    %192 = vector.broadcast %191 : vector<2x1xf32> to vector<2x512xf32>
    %193 = arith.mulf %192, %190 : vector<2x512xf32>
    %194 = arith.addf %174, %193 : vector<2x512xf32>
    %c105_i32 = arith.constant 105 : i32
    %195 = tpu.dynamic_rotate %13 by %c105_i32 dim 1 : vector<2x512xf32>, i32 -> vector<2x512xf32>
    %196 = vector.extract_strided_slice %14 {offsets = [0, 35], sizes = [2, 1], strides = [1, 1]} : vector<2x49xf32> to vector<2x1xf32>
    %197 = vector.broadcast %196 : vector<2x1xf32> to vector<2x512xf32>
    %198 = arith.mulf %197, %195 : vector<2x512xf32>
    %199 = arith.addf %179, %198 : vector<2x512xf32>
    %c106_i32 = arith.constant 106 : i32
    %200 = tpu.dynamic_rotate %13 by %c106_i32 dim 1 : vector<2x512xf32>, i32 -> vector<2x512xf32>
    %201 = vector.extract_strided_slice %14 {offsets = [0, 36], sizes = [2, 1], strides = [1, 1]} : vector<2x49xf32> to vector<2x1xf32>
    %202 = vector.broadcast %201 : vector<2x1xf32> to vector<2x512xf32>
    %203 = arith.mulf %202, %200 : vector<2x512xf32>
    %204 = arith.addf %184, %203 : vector<2x512xf32>
    %c107_i32 = arith.constant 107 : i32
    %205 = tpu.dynamic_rotate %13 by %c107_i32 dim 1 : vector<2x512xf32>, i32 -> vector<2x512xf32>
    %206 = vector.extract_strided_slice %14 {offsets = [0, 37], sizes = [2, 1], strides = [1, 1]} : vector<2x49xf32> to vector<2x1xf32>
    %207 = vector.broadcast %206 : vector<2x1xf32> to vector<2x512xf32>
    %208 = arith.mulf %207, %205 : vector<2x512xf32>
    %209 = arith.addf %189, %208 : vector<2x512xf32>
    %c108_i32 = arith.constant 108 : i32
    %210 = tpu.dynamic_rotate %13 by %c108_i32 dim 1 : vector<2x512xf32>, i32 -> vector<2x512xf32>
    %211 = vector.extract_strided_slice %14 {offsets = [0, 38], sizes = [2, 1], strides = [1, 1]} : vector<2x49xf32> to vector<2x1xf32>
    %212 = vector.broadcast %211 : vector<2x1xf32> to vector<2x512xf32>
    %213 = arith.mulf %212, %210 : vector<2x512xf32>
    %214 = arith.addf %194, %213 : vector<2x512xf32>
    %c109_i32 = arith.constant 109 : i32
    %215 = tpu.dynamic_rotate %13 by %c109_i32 dim 1 : vector<2x512xf32>, i32 -> vector<2x512xf32>
    %216 = vector.extract_strided_slice %14 {offsets = [0, 39], sizes = [2, 1], strides = [1, 1]} : vector<2x49xf32> to vector<2x1xf32>
    %217 = vector.broadcast %216 : vector<2x1xf32> to vector<2x512xf32>
    %218 = arith.mulf %217, %215 : vector<2x512xf32>
    %219 = arith.addf %199, %218 : vector<2x512xf32>
    %c110_i32 = arith.constant 110 : i32
    %220 = tpu.dynamic_rotate %13 by %c110_i32 dim 1 : vector<2x512xf32>, i32 -> vector<2x512xf32>
    %221 = vector.extract_strided_slice %14 {offsets = [0, 40], sizes = [2, 1], strides = [1, 1]} : vector<2x49xf32> to vector<2x1xf32>
    %222 = vector.broadcast %221 : vector<2x1xf32> to vector<2x512xf32>
    %223 = arith.mulf %222, %220 : vector<2x512xf32>
    %224 = arith.addf %204, %223 : vector<2x512xf32>
    %c111_i32 = arith.constant 111 : i32
    %225 = tpu.dynamic_rotate %13 by %c111_i32 dim 1 : vector<2x512xf32>, i32 -> vector<2x512xf32>
    %226 = vector.extract_strided_slice %14 {offsets = [0, 41], sizes = [2, 1], strides = [1, 1]} : vector<2x49xf32> to vector<2x1xf32>
    %227 = vector.broadcast %226 : vector<2x1xf32> to vector<2x512xf32>
    %228 = arith.mulf %227, %225 : vector<2x512xf32>
    %229 = arith.addf %209, %228 : vector<2x512xf32>
    %c126_i32 = arith.constant 126 : i32
    %230 = tpu.dynamic_rotate %13 by %c126_i32 dim 1 : vector<2x512xf32>, i32 -> vector<2x512xf32>
    %231 = vector.extract_strided_slice %14 {offsets = [0, 42], sizes = [2, 1], strides = [1, 1]} : vector<2x49xf32> to vector<2x1xf32>
    %232 = vector.broadcast %231 : vector<2x1xf32> to vector<2x512xf32>
    %233 = arith.mulf %232, %230 : vector<2x512xf32>
    %234 = arith.addf %214, %233 : vector<2x512xf32>
    %c127_i32 = arith.constant 127 : i32
    %235 = tpu.dynamic_rotate %13 by %c127_i32 dim 1 : vector<2x512xf32>, i32 -> vector<2x512xf32>
    %236 = vector.extract_strided_slice %14 {offsets = [0, 43], sizes = [2, 1], strides = [1, 1]} : vector<2x49xf32> to vector<2x1xf32>
    %237 = vector.broadcast %236 : vector<2x1xf32> to vector<2x512xf32>
    %238 = arith.mulf %237, %235 : vector<2x512xf32>
    %239 = arith.addf %219, %238 : vector<2x512xf32>
    %c128_i32 = arith.constant 128 : i32
    %240 = tpu.dynamic_rotate %13 by %c128_i32 dim 1 : vector<2x512xf32>, i32 -> vector<2x512xf32>
    %241 = vector.extract_strided_slice %14 {offsets = [0, 44], sizes = [2, 1], strides = [1, 1]} : vector<2x49xf32> to vector<2x1xf32>
    %242 = vector.broadcast %241 : vector<2x1xf32> to vector<2x512xf32>
    %243 = arith.mulf %242, %240 : vector<2x512xf32>
    %244 = arith.addf %224, %243 : vector<2x512xf32>
    %c129_i32 = arith.constant 129 : i32
    %245 = tpu.dynamic_rotate %13 by %c129_i32 dim 1 : vector<2x512xf32>, i32 -> vector<2x512xf32>
    %246 = vector.extract_strided_slice %14 {offsets = [0, 45], sizes = [2, 1], strides = [1, 1]} : vector<2x49xf32> to vector<2x1xf32>
    %247 = vector.broadcast %246 : vector<2x1xf32> to vector<2x512xf32>
    %248 = arith.mulf %247, %245 : vector<2x512xf32>
    %249 = arith.addf %229, %248 : vector<2x512xf32>
    %c130_i32 = arith.constant 130 : i32
    %250 = tpu.dynamic_rotate %13 by %c130_i32 dim 1 : vector<2x512xf32>, i32 -> vector<2x512xf32>
    %251 = vector.extract_strided_slice %14 {offsets = [0, 46], sizes = [2, 1], strides = [1, 1]} : vector<2x49xf32> to vector<2x1xf32>
    %252 = vector.broadcast %251 : vector<2x1xf32> to vector<2x512xf32>
    %253 = arith.mulf %252, %250 : vector<2x512xf32>
    %254 = arith.addf %234, %253 : vector<2x512xf32>
    %c131_i32 = arith.constant 131 : i32
    %255 = tpu.dynamic_rotate %13 by %c131_i32 dim 1 : vector<2x512xf32>, i32 -> vector<2x512xf32>
    %256 = vector.extract_strided_slice %14 {offsets = [0, 47], sizes = [2, 1], strides = [1, 1]} : vector<2x49xf32> to vector<2x1xf32>
    %257 = vector.broadcast %256 : vector<2x1xf32> to vector<2x512xf32>
    %258 = arith.mulf %257, %255 : vector<2x512xf32>
    %259 = arith.addf %239, %258 : vector<2x512xf32>
    %c132_i32 = arith.constant 132 : i32
    %260 = tpu.dynamic_rotate %13 by %c132_i32 dim 1 : vector<2x512xf32>, i32 -> vector<2x512xf32>
    %261 = vector.extract_strided_slice %14 {offsets = [0, 48], sizes = [2, 1], strides = [1, 1]} : vector<2x49xf32> to vector<2x1xf32>
    %262 = vector.broadcast %261 : vector<2x1xf32> to vector<2x512xf32>
    %263 = arith.mulf %262, %260 : vector<2x512xf32>
    %264 = arith.addf %244, %263 : vector<2x512xf32>
    %265 = arith.addf %264, %249 : vector<2x512xf32>
    %266 = arith.addf %254, %259 : vector<2x512xf32>
    %267 = arith.addf %265, %266 : vector<2x512xf32>
    %cst_15 = arith.constant 0.000000e+00 : f32
    %268 = vector.broadcast %cst_15 : f32 to vector<2x512xf32>
    %cst_16 = arith.constant 0.000000e+00 : f32
    %269 = vector.broadcast %cst_16 : f32 to vector<2x512xf32>
    %cst_17 = arith.constant 0.000000e+00 : f32
    %270 = vector.broadcast %cst_17 : f32 to vector<2x512xf32>
    %cst_18 = arith.constant 0.000000e+00 : f32
    %271 = vector.broadcast %cst_18 : f32 to vector<2x512xf32>
    %272 = vector.extract_strided_slice %15 {offsets = [0, 0], sizes = [2, 1], strides = [1, 1]} : vector<2x25xf32> to vector<2x1xf32>
    %273 = vector.broadcast %272 : vector<2x1xf32> to vector<2x512xf32>
    %274 = arith.mulf %273, %267 : vector<2x512xf32>
    %275 = arith.addf %268, %274 : vector<2x512xf32>
    %c1_i32_19 = arith.constant 1 : i32
    %276 = tpu.dynamic_rotate %267 by %c1_i32_19 dim 1 : vector<2x512xf32>, i32 -> vector<2x512xf32>
    %277 = vector.extract_strided_slice %15 {offsets = [0, 1], sizes = [2, 1], strides = [1, 1]} : vector<2x25xf32> to vector<2x1xf32>
    %278 = vector.broadcast %277 : vector<2x1xf32> to vector<2x512xf32>
    %279 = arith.mulf %278, %276 : vector<2x512xf32>
    %280 = arith.addf %269, %279 : vector<2x512xf32>
    %c2_i32_20 = arith.constant 2 : i32
    %281 = tpu.dynamic_rotate %267 by %c2_i32_20 dim 1 : vector<2x512xf32>, i32 -> vector<2x512xf32>
    %282 = vector.extract_strided_slice %15 {offsets = [0, 2], sizes = [2, 1], strides = [1, 1]} : vector<2x25xf32> to vector<2x1xf32>
    %283 = vector.broadcast %282 : vector<2x1xf32> to vector<2x512xf32>
    %284 = arith.mulf %283, %281 : vector<2x512xf32>
    %285 = arith.addf %270, %284 : vector<2x512xf32>
    %c3_i32_21 = arith.constant 3 : i32
    %286 = tpu.dynamic_rotate %267 by %c3_i32_21 dim 1 : vector<2x512xf32>, i32 -> vector<2x512xf32>
    %287 = vector.extract_strided_slice %15 {offsets = [0, 3], sizes = [2, 1], strides = [1, 1]} : vector<2x25xf32> to vector<2x1xf32>
    %288 = vector.broadcast %287 : vector<2x1xf32> to vector<2x512xf32>
    %289 = arith.mulf %288, %286 : vector<2x512xf32>
    %290 = arith.addf %271, %289 : vector<2x512xf32>
    %c4_i32_22 = arith.constant 4 : i32
    %291 = tpu.dynamic_rotate %267 by %c4_i32_22 dim 1 : vector<2x512xf32>, i32 -> vector<2x512xf32>
    %292 = vector.extract_strided_slice %15 {offsets = [0, 4], sizes = [2, 1], strides = [1, 1]} : vector<2x25xf32> to vector<2x1xf32>
    %293 = vector.broadcast %292 : vector<2x1xf32> to vector<2x512xf32>
    %294 = arith.mulf %293, %291 : vector<2x512xf32>
    %295 = arith.addf %275, %294 : vector<2x512xf32>
    %c21_i32_23 = arith.constant 21 : i32
    %296 = tpu.dynamic_rotate %267 by %c21_i32_23 dim 1 : vector<2x512xf32>, i32 -> vector<2x512xf32>
    %297 = vector.extract_strided_slice %15 {offsets = [0, 5], sizes = [2, 1], strides = [1, 1]} : vector<2x25xf32> to vector<2x1xf32>
    %298 = vector.broadcast %297 : vector<2x1xf32> to vector<2x512xf32>
    %299 = arith.mulf %298, %296 : vector<2x512xf32>
    %300 = arith.addf %280, %299 : vector<2x512xf32>
    %c22_i32_24 = arith.constant 22 : i32
    %301 = tpu.dynamic_rotate %267 by %c22_i32_24 dim 1 : vector<2x512xf32>, i32 -> vector<2x512xf32>
    %302 = vector.extract_strided_slice %15 {offsets = [0, 6], sizes = [2, 1], strides = [1, 1]} : vector<2x25xf32> to vector<2x1xf32>
    %303 = vector.broadcast %302 : vector<2x1xf32> to vector<2x512xf32>
    %304 = arith.mulf %303, %301 : vector<2x512xf32>
    %305 = arith.addf %285, %304 : vector<2x512xf32>
    %c23_i32_25 = arith.constant 23 : i32
    %306 = tpu.dynamic_rotate %267 by %c23_i32_25 dim 1 : vector<2x512xf32>, i32 -> vector<2x512xf32>
    %307 = vector.extract_strided_slice %15 {offsets = [0, 7], sizes = [2, 1], strides = [1, 1]} : vector<2x25xf32> to vector<2x1xf32>
    %308 = vector.broadcast %307 : vector<2x1xf32> to vector<2x512xf32>
    %309 = arith.mulf %308, %306 : vector<2x512xf32>
    %310 = arith.addf %290, %309 : vector<2x512xf32>
    %c24_i32_26 = arith.constant 24 : i32
    %311 = tpu.dynamic_rotate %267 by %c24_i32_26 dim 1 : vector<2x512xf32>, i32 -> vector<2x512xf32>
    %312 = vector.extract_strided_slice %15 {offsets = [0, 8], sizes = [2, 1], strides = [1, 1]} : vector<2x25xf32> to vector<2x1xf32>
    %313 = vector.broadcast %312 : vector<2x1xf32> to vector<2x512xf32>
    %314 = arith.mulf %313, %311 : vector<2x512xf32>
    %315 = arith.addf %295, %314 : vector<2x512xf32>
    %c25_i32_27 = arith.constant 25 : i32
    %316 = tpu.dynamic_rotate %267 by %c25_i32_27 dim 1 : vector<2x512xf32>, i32 -> vector<2x512xf32>
    %317 = vector.extract_strided_slice %15 {offsets = [0, 9], sizes = [2, 1], strides = [1, 1]} : vector<2x25xf32> to vector<2x1xf32>
    %318 = vector.broadcast %317 : vector<2x1xf32> to vector<2x512xf32>
    %319 = arith.mulf %318, %316 : vector<2x512xf32>
    %320 = arith.addf %300, %319 : vector<2x512xf32>
    %c42_i32_28 = arith.constant 42 : i32
    %321 = tpu.dynamic_rotate %267 by %c42_i32_28 dim 1 : vector<2x512xf32>, i32 -> vector<2x512xf32>
    %322 = vector.extract_strided_slice %15 {offsets = [0, 10], sizes = [2, 1], strides = [1, 1]} : vector<2x25xf32> to vector<2x1xf32>
    %323 = vector.broadcast %322 : vector<2x1xf32> to vector<2x512xf32>
    %324 = arith.mulf %323, %321 : vector<2x512xf32>
    %325 = arith.addf %305, %324 : vector<2x512xf32>
    %c43_i32_29 = arith.constant 43 : i32
    %326 = tpu.dynamic_rotate %267 by %c43_i32_29 dim 1 : vector<2x512xf32>, i32 -> vector<2x512xf32>
    %327 = vector.extract_strided_slice %15 {offsets = [0, 11], sizes = [2, 1], strides = [1, 1]} : vector<2x25xf32> to vector<2x1xf32>
    %328 = vector.broadcast %327 : vector<2x1xf32> to vector<2x512xf32>
    %329 = arith.mulf %328, %326 : vector<2x512xf32>
    %330 = arith.addf %310, %329 : vector<2x512xf32>
    %c44_i32_30 = arith.constant 44 : i32
    %331 = tpu.dynamic_rotate %267 by %c44_i32_30 dim 1 : vector<2x512xf32>, i32 -> vector<2x512xf32>
    %332 = vector.extract_strided_slice %15 {offsets = [0, 12], sizes = [2, 1], strides = [1, 1]} : vector<2x25xf32> to vector<2x1xf32>
    %333 = vector.broadcast %332 : vector<2x1xf32> to vector<2x512xf32>
    %334 = arith.mulf %333, %331 : vector<2x512xf32>
    %335 = arith.addf %315, %334 : vector<2x512xf32>
    %c45_i32_31 = arith.constant 45 : i32
    %336 = tpu.dynamic_rotate %267 by %c45_i32_31 dim 1 : vector<2x512xf32>, i32 -> vector<2x512xf32>
    %337 = vector.extract_strided_slice %15 {offsets = [0, 13], sizes = [2, 1], strides = [1, 1]} : vector<2x25xf32> to vector<2x1xf32>
    %338 = vector.broadcast %337 : vector<2x1xf32> to vector<2x512xf32>
    %339 = arith.mulf %338, %336 : vector<2x512xf32>
    %340 = arith.addf %320, %339 : vector<2x512xf32>
    %c46_i32_32 = arith.constant 46 : i32
    %341 = tpu.dynamic_rotate %267 by %c46_i32_32 dim 1 : vector<2x512xf32>, i32 -> vector<2x512xf32>
    %342 = vector.extract_strided_slice %15 {offsets = [0, 14], sizes = [2, 1], strides = [1, 1]} : vector<2x25xf32> to vector<2x1xf32>
    %343 = vector.broadcast %342 : vector<2x1xf32> to vector<2x512xf32>
    %344 = arith.mulf %343, %341 : vector<2x512xf32>
    %345 = arith.addf %325, %344 : vector<2x512xf32>
    %c63_i32_33 = arith.constant 63 : i32
    %346 = tpu.dynamic_rotate %267 by %c63_i32_33 dim 1 : vector<2x512xf32>, i32 -> vector<2x512xf32>
    %347 = vector.extract_strided_slice %15 {offsets = [0, 15], sizes = [2, 1], strides = [1, 1]} : vector<2x25xf32> to vector<2x1xf32>
    %348 = vector.broadcast %347 : vector<2x1xf32> to vector<2x512xf32>
    %349 = arith.mulf %348, %346 : vector<2x512xf32>
    %350 = arith.addf %330, %349 : vector<2x512xf32>
    %c64_i32_34 = arith.constant 64 : i32
    %351 = tpu.dynamic_rotate %267 by %c64_i32_34 dim 1 : vector<2x512xf32>, i32 -> vector<2x512xf32>
    %352 = vector.extract_strided_slice %15 {offsets = [0, 16], sizes = [2, 1], strides = [1, 1]} : vector<2x25xf32> to vector<2x1xf32>
    %353 = vector.broadcast %352 : vector<2x1xf32> to vector<2x512xf32>
    %354 = arith.mulf %353, %351 : vector<2x512xf32>
    %355 = arith.addf %335, %354 : vector<2x512xf32>
    %c65_i32_35 = arith.constant 65 : i32
    %356 = tpu.dynamic_rotate %267 by %c65_i32_35 dim 1 : vector<2x512xf32>, i32 -> vector<2x512xf32>
    %357 = vector.extract_strided_slice %15 {offsets = [0, 17], sizes = [2, 1], strides = [1, 1]} : vector<2x25xf32> to vector<2x1xf32>
    %358 = vector.broadcast %357 : vector<2x1xf32> to vector<2x512xf32>
    %359 = arith.mulf %358, %356 : vector<2x512xf32>
    %360 = arith.addf %340, %359 : vector<2x512xf32>
    %c66_i32_36 = arith.constant 66 : i32
    %361 = tpu.dynamic_rotate %267 by %c66_i32_36 dim 1 : vector<2x512xf32>, i32 -> vector<2x512xf32>
    %362 = vector.extract_strided_slice %15 {offsets = [0, 18], sizes = [2, 1], strides = [1, 1]} : vector<2x25xf32> to vector<2x1xf32>
    %363 = vector.broadcast %362 : vector<2x1xf32> to vector<2x512xf32>
    %364 = arith.mulf %363, %361 : vector<2x512xf32>
    %365 = arith.addf %345, %364 : vector<2x512xf32>
    %c67_i32_37 = arith.constant 67 : i32
    %366 = tpu.dynamic_rotate %267 by %c67_i32_37 dim 1 : vector<2x512xf32>, i32 -> vector<2x512xf32>
    %367 = vector.extract_strided_slice %15 {offsets = [0, 19], sizes = [2, 1], strides = [1, 1]} : vector<2x25xf32> to vector<2x1xf32>
    %368 = vector.broadcast %367 : vector<2x1xf32> to vector<2x512xf32>
    %369 = arith.mulf %368, %366 : vector<2x512xf32>
    %370 = arith.addf %350, %369 : vector<2x512xf32>
    %c84_i32_38 = arith.constant 84 : i32
    %371 = tpu.dynamic_rotate %267 by %c84_i32_38 dim 1 : vector<2x512xf32>, i32 -> vector<2x512xf32>
    %372 = vector.extract_strided_slice %15 {offsets = [0, 20], sizes = [2, 1], strides = [1, 1]} : vector<2x25xf32> to vector<2x1xf32>
    %373 = vector.broadcast %372 : vector<2x1xf32> to vector<2x512xf32>
    %374 = arith.mulf %373, %371 : vector<2x512xf32>
    %375 = arith.addf %355, %374 : vector<2x512xf32>
    %c85_i32_39 = arith.constant 85 : i32
    %376 = tpu.dynamic_rotate %267 by %c85_i32_39 dim 1 : vector<2x512xf32>, i32 -> vector<2x512xf32>
    %377 = vector.extract_strided_slice %15 {offsets = [0, 21], sizes = [2, 1], strides = [1, 1]} : vector<2x25xf32> to vector<2x1xf32>
    %378 = vector.broadcast %377 : vector<2x1xf32> to vector<2x512xf32>
    %379 = arith.mulf %378, %376 : vector<2x512xf32>
    %380 = arith.addf %360, %379 : vector<2x512xf32>
    %c86_i32_40 = arith.constant 86 : i32
    %381 = tpu.dynamic_rotate %267 by %c86_i32_40 dim 1 : vector<2x512xf32>, i32 -> vector<2x512xf32>
    %382 = vector.extract_strided_slice %15 {offsets = [0, 22], sizes = [2, 1], strides = [1, 1]} : vector<2x25xf32> to vector<2x1xf32>
    %383 = vector.broadcast %382 : vector<2x1xf32> to vector<2x512xf32>
    %384 = arith.mulf %383, %381 : vector<2x512xf32>
    %385 = arith.addf %365, %384 : vector<2x512xf32>
    %c87_i32_41 = arith.constant 87 : i32
    %386 = tpu.dynamic_rotate %267 by %c87_i32_41 dim 1 : vector<2x512xf32>, i32 -> vector<2x512xf32>
    %387 = vector.extract_strided_slice %15 {offsets = [0, 23], sizes = [2, 1], strides = [1, 1]} : vector<2x25xf32> to vector<2x1xf32>
    %388 = vector.broadcast %387 : vector<2x1xf32> to vector<2x512xf32>
    %389 = arith.mulf %388, %386 : vector<2x512xf32>
    %390 = arith.addf %370, %389 : vector<2x512xf32>
    %c88_i32_42 = arith.constant 88 : i32
    %391 = tpu.dynamic_rotate %267 by %c88_i32_42 dim 1 : vector<2x512xf32>, i32 -> vector<2x512xf32>
    %392 = vector.extract_strided_slice %15 {offsets = [0, 24], sizes = [2, 1], strides = [1, 1]} : vector<2x25xf32> to vector<2x1xf32>
    %393 = vector.broadcast %392 : vector<2x1xf32> to vector<2x512xf32>
    %394 = arith.mulf %393, %391 : vector<2x512xf32>
    %395 = arith.addf %375, %394 : vector<2x512xf32>
    %396 = arith.addf %395, %380 : vector<2x512xf32>
    %397 = arith.addf %385, %390 : vector<2x512xf32>
    %398 = arith.addf %396, %397 : vector<2x512xf32>
    %399 = vector.broadcast %16 : vector<2x1xf32> to vector<2x512xf32>
    %400 = arith.mulf %398, %399 : vector<2x512xf32>
    %cst_43 = arith.constant dense<0.000000e+00> : vector<2xf32>
    %401 = vector.multi_reduction <add>, %400, %cst_43 [1] : vector<2x512xf32> to vector<2xf32>
    %402 = vector.shape_cast %401 : vector<2xf32> to vector<2x1xf32>
    %403 = tpu.reciprocal %402 {approx = true} : vector<2x1xf32> -> vector<2x1xf32>
    %404 = arith.mulf %402, %403 : vector<2x1xf32>
    %cst_44 = arith.constant 2.000000e+00 : f32
    %405 = vector.broadcast %cst_44 : f32 to vector<2x1xf32>
    %406 = arith.subf %405, %404 : vector<2x1xf32>
    %407 = arith.mulf %403, %406 : vector<2x1xf32>
    %408 = vector.broadcast %407 : vector<2x1xf32> to vector<2x512xf32>
    %409 = arith.mulf %400, %408 : vector<2x512xf32>
    %c0_45 = arith.constant 0 : index
    %c0_46 = arith.constant 0 : index
    %410 = vector.load %arg5[%c0_45, %c0_46] : memref<2x512xf32, #tpu.memory_space<vmem>>, vector<2x512xf32>
    tpu.vector_store %arg5[%c0_45, %c0_46], %409 {strides = array<i32>} : memref<2x512xf32, #tpu.memory_space<vmem>>, vector<2x512xf32>,
    return
  }
}

</mosaic_0001>

<llo_original>
// kernel: kernel_forward.1
$region0: #{kernel_forward.1}
  #allocation0 [shape = 'u32[]', space=smem, size = 0x4, offset = 0x4, fixed_abs, tag = 'smem constant byte address 0x4 - core index']
  #allocation1 [shape = 'u32[144,128]{1,0:T(1,128)}', space=vmem, size = 0x12000, scoped, tag = 'internal scratch']
  %s0 = inlined_call_operand.vmem [shape: f32[2,256], index: 0, kind: input, shape index: {}]
  %s1 = inlined_call_operand.vmem [shape: f32[256,64], index: 1, kind: input, shape index: {}]
  %s2 = inlined_call_operand.vmem [shape: f32[1,64], index: 2, kind: input, shape index: {}]
  %s3 = inlined_call_operand.vmem [shape: f32[64,640], index: 3, kind: input, shape index: {}]
  %s4 = inlined_call_operand.vmem [shape: f32[1,640], index: 4, kind: input, shape index: {}]
  %s5 = inlined_call_operand.vmem [shape: f32[2,512], index: 5, kind: output, shape index: {}]
  %s6 = sld [smem:[#allocation0]]
  $region30: #{kernel_forward.1} parent=0
    _
  %s8 = ssub.s32 1, %s6
  %s9 = scalar_select 0, %s8, %s6
  // Predicated region
  $region2: #{kernel_forward.1} parent=0 // pred_check
    _
  $region3: #{kernel_forward.1} parent=0 // pred_check_branch
    %11 = sbr.rel (0) target = $region5
  $region4: #{kernel_forward.1} parent=0 // pred_region
    _
  $region5: #{kernel_forward.1} parent=0 // pred_fallthru
    _
  // Predicated region
  $region6: #{kernel_forward.1} parent=0 // pred_check
    _
  $region7: #{kernel_forward.1} parent=0 // pred_check_branch
    %13 = sbr.rel (0) target = $region9
  $region8: #{kernel_forward.1} parent=0 // pred_region
    _
  $region9: #{kernel_forward.1} parent=0 // pred_fallthru
    _
  // Predicated region
  $region10: #{kernel_forward.1} parent=0 // pred_check
    _
  $region11: #{kernel_forward.1} parent=0 // pred_check_branch
    %15 = sbr.rel (0) target = $region13
  $region12: #{kernel_forward.1} parent=0 // pred_region
    _
  $region13: #{kernel_forward.1} parent=0 // pred_fallthru
    _
  // Predicated region
  $region14: #{kernel_forward.1} parent=0 // pred_check
    _
  $region15: #{kernel_forward.1} parent=0 // pred_check_branch
    %17 = sbr.rel (0) target = $region17
  $region16: #{kernel_forward.1} parent=0 // pred_region
    _
  $region17: #{kernel_forward.1} parent=0 // pred_fallthru
    _
  // Predicated region
  $region18: #{kernel_forward.1} parent=0 // pred_check
    _
  $region19: #{kernel_forward.1} parent=0 // pred_check_branch
    %19 = sbr.rel (0) target = $region21
  $region20: #{kernel_forward.1} parent=0 // pred_region
    _
  $region21: #{kernel_forward.1} parent=0 // pred_fallthru
    _
  %v20 = vld [vmem:[%s0] sm:$0xf]
  %v21 = vld [vmem:[%s1] sm:$0xff]
  %v22 = vld [vmem:[%s1 + $0x8] sm:$0xff]
  %v23 = vld [vmem:[%s1 + $0x10] sm:$0xff]
  %v24 = vld [vmem:[%s1 + $0x18] sm:$0xff]
  %v25 = vld [vmem:[%s1 + $0x20] sm:$0xff]
  %v26 = vld [vmem:[%s1 + $0x28] sm:$0xff]
  %v27 = vld [vmem:[%s1 + $0x30] sm:$0xff]
  %v28 = vld [vmem:[%s1 + $0x38] sm:$0xff]
  %v29 = vld [vmem:[%s1 + $0x40] sm:$0xff]
  %v30 = vld [vmem:[%s1 + $0x48] sm:$0xff]
  %v31 = vld [vmem:[%s1 + $0x50] sm:$0xff]
  %v32 = vld [vmem:[%s1 + $0x58] sm:$0xff]
  %v33 = vld [vmem:[%s1 + $0x60] sm:$0xff]
  %v34 = vld [vmem:[%s1 + $0x68] sm:$0xff]
  %v35 = vld [vmem:[%s1 + $0x70] sm:$0xff]
  %v36 = vld [vmem:[%s1 + $0x78] sm:$0xff]
  %v37 = vld [vmem:[%s1 + $0x80] sm:$0xff]
  %v38 = vld [vmem:[%s1 + $0x88] sm:$0xff]
  %v39 = vld [vmem:[%s1 + $0x90] sm:$0xff]
  %v40 = vld [vmem:[%s1 + $0x98] sm:$0xff]
  %v41 = vld [vmem:[%s1 + $0xa0] sm:$0xff]
  %v42 = vld [vmem:[%s1 + $0xa8] sm:$0xff]
  %v43 = vld [vmem:[%s1 + $0xb0] sm:$0xff]
  %v44 = vld [vmem:[%s1 + $0xb8] sm:$0xff]
  %v45 = vld [vmem:[%s1 + $0xc0] sm:$0xff]
  %v46 = vld [vmem:[%s1 + $0xc8] sm:$0xff]
  %v47 = vld [vmem:[%s1 + $0xd0] sm:$0xff]
  %v48 = vld [vmem:[%s1 + $0xd8] sm:$0xff]
  %v49 = vld [vmem:[%s1 + $0xe0] sm:$0xff]
  %v50 = vld [vmem:[%s1 + $0xe8] sm:$0xff]
  %v51 = vld [vmem:[%s1 + $0xf0] sm:$0xff]
  %v52 = vld [vmem:[%s1 + $0xf8] sm:$0xff]
  %v53 = vld [vmem:[%s2] sm:$0x1]
  %v55 = vlaneseq
  %v56 = vshrl.u32 %v55, 7
  %v57 = vsub.s32 0, %v56
  %v58 = vrot.slane %v53, %v57
  %v62 = vunpack.c.l.s4 1983009808
  %v63 = vunpack.c.0.s8 %v62
  %v64 = vlaneseq
  %v65 = vshrl.u32 %v64, 7
  %v66 = vsub.s32 %v63, %v65
  %v67 = vrot.slane %v20, %v66
  %v68 = vcombine.high %v67, %v67
  %71 = vmatprep.subr.mxu0 0.0
  %72 = vmatpush1.msra.mxu0 %v21
  %73 = vmatprep.subr.mxu0 0.0
  %74 = vmatpush1.msra.mxu0 %v22
  %75 = vmatprep.subr.mxu0 0.0
  %76 = vmatpush1.msra.mxu0 %v23
  %77 = vmatprep.subr.mxu0 0.0
  %78 = vmatpush1.msra.mxu0 %v24
  %79 = vmatprep.subr.mxu0 0.0
  %80 = vmatpush1.msra.mxu0 %v25
  %81 = vmatprep.subr.mxu0 0.0
  %82 = vmatpush1.msra.mxu0 %v26
  %83 = vmatprep.subr.mxu0 0.0
  %84 = vmatpush1.msra.mxu0 %v27
  %85 = vmatprep.subr.mxu0 0.0
  %86 = vmatpush1.msra.mxu0 %v28
  %87 = vmatprep.subr.mxu0 0.0
  %88 = vmatpush1.msra.mxu0 %v29
  %89 = vmatprep.subr.mxu0 0.0
  %90 = vmatpush1.msra.mxu0 %v30
  %91 = vmatprep.subr.mxu0 0.0
  %92 = vmatpush1.msra.mxu0 %v31
  %93 = vmatprep.subr.mxu0 0.0
  %94 = vmatpush1.msra.mxu0 %v32
  %95 = vmatprep.subr.mxu0 0.0
  %96 = vmatpush1.msra.mxu0 %v33
  %97 = vmatprep.subr.mxu0 0.0
  %98 = vmatpush1.msra.mxu0 %v34
  %99 = vmatprep.subr.mxu0 0.0
  %100 = vmatpush1.msra.mxu0 %v35
  %101 = vmatprep.subr.mxu0 0.0
  %102 = vmatpush1.msra.mxu0 %v36
  %103 = vmatprep.subr.mxu0 0.0
  %104 = vmatpush1.msra.mxu0 %v37
  %105 = vmatprep.subr.mxu0 0.0
  %106 = vmatpush1.msra.mxu0 %v38
  %107 = vmatprep.subr.mxu0 0.0
  %108 = vmatpush1.msra.mxu0 %v39
  %109 = vmatprep.subr.mxu0 0.0
  %110 = vmatpush1.msra.mxu0 %v40
  %111 = vmatprep.subr.mxu0 0.0
  %112 = vmatpush1.msra.mxu0 %v41
  %113 = vmatprep.subr.mxu0 0.0
  %114 = vmatpush1.msra.mxu0 %v42
  %115 = vmatprep.subr.mxu0 0.0
  %116 = vmatpush1.msra.mxu0 %v43
  %117 = vmatprep.subr.mxu0 0.0
  %118 = vmatpush1.msra.mxu0 %v44
  %119 = vmatprep.subr.mxu0 0.0
  %120 = vmatpush1.msra.mxu0 %v45
  %121 = vmatprep.subr.mxu0 0.0
  %122 = vmatpush1.msra.mxu0 %v46
  %123 = vmatprep.subr.mxu0 0.0
  %124 = vmatpush1.msra.mxu0 %v47
  %125 = vmatprep.subr.mxu0 0.0
  %126 = vmatpush1.msra.mxu0 %v48
  %127 = vmatprep.subr.mxu0 0.0
  %128 = vmatpush1.msra.mxu0 %v49
  %129 = vmatprep.subr.mxu0 0.0
  %130 = vmatpush1.msra.mxu0 %v50
  %131 = vmatprep.subr.mxu0 0.0
  %132 = vmatpush1.msra.mxu0 %v51
  %133 = vmatprep.subr.mxu0 0.0
  %134 = vmatpush1.msra.mxu0 %v52
  %135 = vmatprep.mubr.f32.mxu0 %v68
  %136 = vmatmul.mubr.f32.gmra.mrb[0].mxu0 %v67
  %v137 = vpop.f32.mrb[0].mxu0
  %v138 = vadd.f32 %v58, %v137
  %v139 = vpop.f32.mrb[0].mxu0
  %140 = vdwg.mxu0
  %v141 = vmax.f32 %v138, 0.0
  %v142 = vld [vmem:[%s3] sm:$0xff]
  %v143 = vld [vmem:[%s3 + $0x8] sm:$0xff]
  %v144 = vld [vmem:[%s3 + $0x10] sm:$0xff]
  %v145 = vld [vmem:[%s3 + $0x18] sm:$0xff]
  %v146 = vld [vmem:[%s3 + $0x20] sm:$0xff]
  %v147 = vld [vmem:[%s3 + $0x28] sm:$0xff]
  %v148 = vld [vmem:[%s3 + $0x30] sm:$0xff]
  %v149 = vld [vmem:[%s3 + $0x38] sm:$0xff]
  %v150 = vld [vmem:[%s3 + $0x40] sm:$0xff]
  %v151 = vld [vmem:[%s3 + $0x48] sm:$0xff]
  %v152 = vld [vmem:[%s3 + $0x50] sm:$0xff]
  %v153 = vld [vmem:[%s3 + $0x58] sm:$0xff]
  %v154 = vld [vmem:[%s3 + $0x60] sm:$0xff]
  %v155 = vld [vmem:[%s3 + $0x68] sm:$0xff]
  %v156 = vld [vmem:[%s3 + $0x70] sm:$0xff]
  %v157 = vld [vmem:[%s3 + $0x78] sm:$0xff]
  %v158 = vld [vmem:[%s3 + $0x80] sm:$0xff]
  %v159 = vld [vmem:[%s3 + $0x88] sm:$0xff]
  %v160 = vld [vmem:[%s3 + $0x90] sm:$0xff]
  %v161 = vld [vmem:[%s3 + $0x98] sm:$0xff]
  %v162 = vld [vmem:[%s3 + $0xa0] sm:$0xff]
  %v163 = vld [vmem:[%s3 + $0xa8] sm:$0xff]
  %v164 = vld [vmem:[%s3 + $0xb0] sm:$0xff]
  %v165 = vld [vmem:[%s3 + $0xb8] sm:$0xff]
  %v166 = vld [vmem:[%s3 + $0xc0] sm:$0xff]
  %v167 = vld [vmem:[%s3 + $0xc8] sm:$0xff]
  %v168 = vld [vmem:[%s3 + $0xd0] sm:$0xff]
  %v169 = vld [vmem:[%s3 + $0xd8] sm:$0xff]
  %v170 = vld [vmem:[%s3 + $0xe0] sm:$0xff]
  %v171 = vld [vmem:[%s3 + $0xe8] sm:$0xff]
  %v172 = vld [vmem:[%s3 + $0xf0] sm:$0xff]
  %v173 = vld [vmem:[%s3 + $0xf8] sm:$0xff]
  %v174 = vld [vmem:[%s3 + $0x100] sm:$0xff]
  %v175 = vld [vmem:[%s3 + $0x108] sm:$0xff]
  %v176 = vld [vmem:[%s3 + $0x110] sm:$0xff]
  %v177 = vld [vmem:[%s3 + $0x118] sm:$0xff]
  %v178 = vld [vmem:[%s3 + $0x120] sm:$0xff]
  %v179 = vld [vmem:[%s3 + $0x128] sm:$0xff]
  %v180 = vld [vmem:[%s3 + $0x130] sm:$0xff]
  %v181 = vld [vmem:[%s3 + $0x138] sm:$0xff]
  %v182 = vld [vmem:[%s4] sm:$0x1f]
  %v184 = vlaneseq
  %v185 = vshrl.u32 %v184, 7
  %v186 = vsub.s32 0, %v185
  %v187 = vrot.slane %v182, %v186
  %v188 = vlaneseq
  %v189 = vshrl.u32 %v188, 7
  %v190 = vsub.s32 1, %v189
  %v191 = vrot.slane %v182, %v190
  %v192 = vlaneseq
  %v193 = vshrl.u32 %v192, 7
  %v194 = vsub.s32 2, %v193
  %v195 = vrot.slane %v182, %v194
  %v196 = vlaneseq
  %v197 = vshrl.u32 %v196, 7
  %v198 = vsub.s32 3, %v197
  %v199 = vrot.slane %v182, %v198
  %v200 = vlaneseq
  %v201 = vshrl.u32 %v200, 7
  %v202 = vsub.s32 4, %v201
  %v203 = vrot.slane %v182, %v202
  %vm209 = vcmask 523264
  %v211 = vsel %vm209, %v141, 0
  %213 = vmatprep.subr.mxu0 %v143
  %214 = vmatpush1.msra.mxu0 %v142
  %215 = vmatprep.subr.mxu0 %v148
  %216 = vmatpush1.msra.mxu0 %v147
  %217 = vmatprep.subr.mxu0 %v153
  %218 = vmatpush1.msra.mxu0 %v152
  %219 = vmatprep.subr.mxu0 %v158
  %220 = vmatpush1.msra.mxu0 %v157
  %221 = vmatprep.subr.mxu0 %v163
  %222 = vmatpush1.msra.mxu0 %v162
  %223 = vmatprep.subr.mxu0 %v168
  %224 = vmatpush1.msra.mxu0 %v167
  %225 = vmatprep.subr.mxu0 %v173
  %226 = vmatpush1.msra.mxu0 %v172
  %227 = vmatprep.subr.mxu0 %v178
  %228 = vmatpush1.msra.mxu0 %v177
  %229 = vmatprep.subr.mxu0 0.0
  %230 = vmatpush1.msra.mxu0 0.0
  %231 = vmatprep.subr.mxu0 0.0
  %232 = vmatpush1.msra.mxu0 0.0
  %233 = vmatprep.subr.mxu0 0.0
  %234 = vmatpush1.msra.mxu0 0.0
  %235 = vmatprep.subr.mxu0 0.0
  %236 = vmatpush1.msra.mxu0 0.0
  %237 = vmatprep.subr.mxu0 0.0
  %238 = vmatpush1.msra.mxu0 0.0
  %239 = vmatprep.subr.mxu0 0.0
  %240 = vmatpush1.msra.mxu0 0.0
  %241 = vmatprep.subr.mxu0 0.0
  %242 = vmatpush1.msra.mxu0 0.0
  %243 = vmatprep.subr.mxu0 0.0
  %244 = vmatpush1.msra.mxu0 0.0
  %245 = vmatprep.subr.mxu0 0.0
  %246 = vmatpush1.msra.mxu0 0.0
  %247 = vmatprep.subr.mxu0 0.0
  %248 = vmatpush1.msra.mxu0 0.0
  %249 = vmatprep.subr.mxu0 0.0
  %250 = vmatpush1.msra.mxu0 0.0
  %251 = vmatprep.subr.mxu0 0.0
  %252 = vmatpush1.msra.mxu0 0.0
  %253 = vmatprep.subr.mxu0 0.0
  %254 = vmatpush1.msra.mxu0 0.0
  %255 = vmatprep.subr.mxu0 0.0
  %256 = vmatpush1.msra.mxu0 0.0
  %257 = vmatprep.subr.mxu0 0.0
  %258 = vmatpush1.msra.mxu0 0.0
  %259 = vmatprep.subr.mxu0 0.0
  %260 = vmatpush1.msra.mxu0 0.0
  %261 = vmatprep.subr.mxu0 0.0
  %262 = vmatpush1.msra.mxu0 0.0
  %263 = vmatprep.subr.mxu0 0.0
  %264 = vmatpush1.msra.mxu0 0.0
  %265 = vmatprep.subr.mxu0 0.0
  %266 = vmatpush1.msra.mxu0 0.0
  %267 = vmatprep.subr.mxu0 0.0
  %268 = vmatpush1.msra.mxu0 0.0
  %269 = vmatprep.subr.mxu0 0.0
  %270 = vmatpush1.msra.mxu0 0.0
  %271 = vmatprep.subr.mxu0 0.0
  %272 = vmatpush1.msra.mxu0 0.0
  %273 = vmatprep.subr.mxu0 0.0
  %274 = vmatpush1.msra.mxu0 0.0
  %275 = vmatprep.subr.mxu0 0.0
  %276 = vmatpush1.msra.mxu0 0.0
  %277 = vmatprep.mubr.f32.mxu0 0.0
  %278 = vmatmul.mubr.f32.gmra.mrb[0].mxu0 %v211
  %v279 = vpop.f32.mrb[0].mxu0
  %v280 = vadd.f32 %v187, %v279
  %v281 = vpop.f32.mrb[0].mxu0
  %v282 = vadd.f32 %v191, %v281
  %283 = vdwg.mxu0
  %284 = vmatprep.subr.mxu0 %v145
  %285 = vmatpush1.msra.mxu0 %v144
  %286 = vmatprep.subr.mxu0 %v150
  %287 = vmatpush1.msra.mxu0 %v149
  %288 = vmatprep.subr.mxu0 %v155
  %289 = vmatpush1.msra.mxu0 %v154
  %290 = vmatprep.subr.mxu0 %v160
  %291 = vmatpush1.msra.mxu0 %v159
  %292 = vmatprep.subr.mxu0 %v165
  %293 = vmatpush1.msra.mxu0 %v164
  %294 = vmatprep.subr.mxu0 %v170
  %295 = vmatpush1.msra.mxu0 %v169
  %296 = vmatprep.subr.mxu0 %v175
  %297 = vmatpush1.msra.mxu0 %v174
  %298 = vmatprep.subr.mxu0 %v180
  %299 = vmatpush1.msra.mxu0 %v179
  %300 = vmatprep.subr.mxu0 0.0
  %301 = vmatpush1.msra.mxu0 0.0
  %302 = vmatprep.subr.mxu0 0.0
  %303 = vmatpush1.msra.mxu0 0.0
  %304 = vmatprep.subr.mxu0 0.0
  %305 = vmatpush1.msra.mxu0 0.0
  %306 = vmatprep.subr.mxu0 0.0
  %307 = vmatpush1.msra.mxu0 0.0
  %308 = vmatprep.subr.mxu0 0.0
  %309 = vmatpush1.msra.mxu0 0.0
  %310 = vmatprep.subr.mxu0 0.0
  %311 = vmatpush1.msra.mxu0 0.0
  %312 = vmatprep.subr.mxu0 0.0
  %313 = vmatpush1.msra.mxu0 0.0
  %314 = vmatprep.subr.mxu0 0.0
  %315 = vmatpush1.msra.mxu0 0.0
  %316 = vmatprep.subr.mxu0 0.0
  %317 = vmatpush1.msra.mxu0 0.0
  %318 = vmatprep.subr.mxu0 0.0
  %319 = vmatpush1.msra.mxu0 0.0
  %320 = vmatprep.subr.mxu0 0.0
  %321 = vmatpush1.msra.mxu0 0.0
  %322 = vmatprep.subr.mxu0 0.0
  %323 = vmatpush1.msra.mxu0 0.0
  %324 = vmatprep.subr.mxu0 0.0
  %325 = vmatpush1.msra.mxu0 0.0
  %326 = vmatprep.subr.mxu0 0.0
  %327 = vmatpush1.msra.mxu0 0.0
  %328 = vmatprep.subr.mxu0 0.0
  %329 = vmatpush1.msra.mxu0 0.0
  %330 = vmatprep.subr.mxu0 0.0
  %331 = vmatpush1.msra.mxu0 0.0
  %332 = vmatprep.subr.mxu0 0.0
  %333 = vmatpush1.msra.mxu0 0.0
  %334 = vmatprep.subr.mxu0 0.0
  %335 = vmatpush1.msra.mxu0 0.0
  %336 = vmatprep.subr.mxu0 0.0
  %337 = vmatpush1.msra.mxu0 0.0
  %338 = vmatprep.subr.mxu0 0.0
  %339 = vmatpush1.msra.mxu0 0.0
  %340 = vmatprep.subr.mxu0 0.0
  %341 = vmatpush1.msra.mxu0 0.0
  %342 = vmatprep.subr.mxu0 0.0
  %343 = vmatpush1.msra.mxu0 0.0
  %344 = vmatprep.subr.mxu0 0.0
  %345 = vmatpush1.msra.mxu0 0.0
  %346 = vmatprep.subr.mxu0 0.0
  %347 = vmatpush1.msra.mxu0 0.0
  %348 = vmatprep.mubr.f32.mxu0 0.0
  %349 = vmatmul.mubr.f32.gmra.mrb[0].mxu0 %v211
  %v350 = vpop.f32.mrb[0].mxu0
  %v351 = vadd.f32 %v195, %v350
  %v352 = vpop.f32.mrb[0].mxu0
  %v353 = vadd.f32 %v199, %v352
  %354 = vdwg.mxu0
  %355 = vmatprep.subr.mxu0 0.0
  %356 = vmatpush1.msra.mxu0 %v146
  %357 = vmatprep.subr.mxu0 0.0
  %358 = vmatpush1.msra.mxu0 %v151
  %359 = vmatprep.subr.mxu0 0.0
  %360 = vmatpush1.msra.mxu0 %v156
  %361 = vmatprep.subr.mxu0 0.0
  %362 = vmatpush1.msra.mxu0 %v161
  %363 = vmatprep.subr.mxu0 0.0
  %364 = vmatpush1.msra.mxu0 %v166
  %365 = vmatprep.subr.mxu0 0.0
  %366 = vmatpush1.msra.mxu0 %v171
  %367 = vmatprep.subr.mxu0 0.0
  %368 = vmatpush1.msra.mxu0 %v176
  %369 = vmatprep.subr.mxu0 0.0
  %370 = vmatpush1.msra.mxu0 %v181
  %371 = vmatprep.subr.mxu0 0.0
  %372 = vmatpush1.msra.mxu0 0.0
  %373 = vmatprep.subr.mxu0 0.0
  %374 = vmatpush1.msra.mxu0 0.0
  %375 = vmatprep.subr.mxu0 0.0
  %376 = vmatpush1.msra.mxu0 0.0
  %377 = vmatprep.subr.mxu0 0.0
  %378 = vmatpush1.msra.mxu0 0.0
  %379 = vmatprep.subr.mxu0 0.0
  %380 = vmatpush1.msra.mxu0 0.0
  %381 = vmatprep.subr.mxu0 0.0
  %382 = vmatpush1.msra.mxu0 0.0
  %383 = vmatprep.subr.mxu0 0.0
  %384 = vmatpush1.msra.mxu0 0.0
  %385 = vmatprep.subr.mxu0 0.0
  %386 = vmatpush1.msra.mxu0 0.0
  %387 = vmatprep.subr.mxu0 0.0
  %388 = vmatpush1.msra.mxu0 0.0
  %389 = vmatprep.subr.mxu0 0.0
  %390 = vmatpush1.msra.mxu0 0.0
  %391 = vmatprep.subr.mxu0 0.0
  %392 = vmatpush1.msra.mxu0 0.0
  %393 = vmatprep.subr.mxu0 0.0
  %394 = vmatpush1.msra.mxu0 0.0
  %395 = vmatprep.subr.mxu0 0.0
  %396 = vmatpush1.msra.mxu0 0.0
  %397 = vmatprep.subr.mxu0 0.0
  %398 = vmatpush1.msra.mxu0 0.0
  %399 = vmatprep.subr.mxu0 0.0
  %400 = vmatpush1.msra.mxu0 0.0
  %401 = vmatprep.subr.mxu0 0.0
  %402 = vmatpush1.msra.mxu0 0.0
  %403 = vmatprep.subr.mxu0 0.0
  %404 = vmatpush1.msra.mxu0 0.0
  %405 = vmatprep.subr.mxu0 0.0
  %406 = vmatpush1.msra.mxu0 0.0
  %407 = vmatprep.subr.mxu0 0.0
  %408 = vmatpush1.msra.mxu0 0.0
  %409 = vmatprep.subr.mxu0 0.0
  %410 = vmatpush1.msra.mxu0 0.0
  %411 = vmatprep.subr.mxu0 0.0
  %412 = vmatpush1.msra.mxu0 0.0
  %413 = vmatprep.subr.mxu0 0.0
  %414 = vmatpush1.msra.mxu0 0.0
  %415 = vmatprep.subr.mxu0 0.0
  %416 = vmatpush1.msra.mxu0 0.0
  %417 = vmatprep.subr.mxu0 0.0
  %418 = vmatpush1.msra.mxu0 0.0
  %419 = vmatprep.mubr.f32.mxu0 0.0
  %420 = vmatmul.mubr.f32.gmra.mrb[0].mxu0 %v211
  %v421 = vpop.f32.mrb[0].mxu0
  %v422 = vadd.f32 %v203, %v421
  %v423 = vpop.f32.mrb[0].mxu0
  %424 = vdwg.mxu0
  %426 = vset.pattern.permute.xlu0 0
  %427 = vperm.xlu0 %426, %v422
  %v428 = vpop.permute.xlu0 %427
  %v430 = vmul.f32 %v428, %v280
  %v431 = vmul.f32 %v428, %v282
  %v432 = vmul.f32 %v428, %v351
  %v433 = vmul.f32 %v428, %v353
  %v434 = vadd.f32 %v430, 0.0
  %v435 = vadd.f32 %v431, 0.0
  %v436 = vadd.f32 %v432, 0.0
  %v437 = vadd.f32 %v433, 0.0
  %438 = vrot.lane.b32.xlu0 %v280, 1
  %v439 = vpop.permute.xlu0 %438
  %440 = vrot.lane.b32.xlu0 %v282, 1
  %v441 = vpop.permute.xlu0 %440
  %442 = vrot.lane.b32.xlu0 %v351, 1
  %v443 = vpop.permute.xlu0 %442
  %444 = vrot.lane.b32.xlu0 %v353, 1
  %v445 = vpop.permute.xlu0 %444
  %v446 = vlaneseq
  %v447 = vand.u32 %v446, 127
  %vm448 = vcmp.lt.s32.totalorder %v447, 1
  %v449 = vsel %vm448, %v443, %v445
  %v450 = vsel %vm448, %v441, %v443
  %v451 = vsel %vm448, %v439, %v441
  %v452 = vsel %vm448, %v445, %v439
  %453 = vset.pattern.permute.xlu0 1
  %454 = vperm.xlu0 %453, %v422
  %v455 = vpop.permute.xlu0 %454
  %v457 = vmul.f32 %v455, %v452
  %v458 = vmul.f32 %v455, %v451
  %v459 = vmul.f32 %v455, %v450
  %v460 = vmul.f32 %v455, %v449
  %v461 = vadd.f32 %v457, 0.0
  %v462 = vadd.f32 %v458, 0.0
  %v463 = vadd.f32 %v459, 0.0
  %v464 = vadd.f32 %v460, 0.0
  %465 = vrot.lane.b32.xlu0 %v280, 2
  %v466 = vpop.permute.xlu0 %465
  %467 = vrot.lane.b32.xlu0 %v282, 2
  %v468 = vpop.permute.xlu0 %467
  %469 = vrot.lane.b32.xlu0 %v351, 2
  %v470 = vpop.permute.xlu0 %469
  %471 = vrot.lane.b32.xlu0 %v353, 2
  %v472 = vpop.permute.xlu0 %471
  %vm473 = vcmp.lt.s32.totalorder %v447, 2
  %v474 = vsel %vm473, %v470, %v472
  %v475 = vsel %vm473, %v468, %v470
  %v476 = vsel %vm473, %v466, %v468
  %v477 = vsel %vm473, %v472, %v466
  %478 = vset.pattern.permute.xlu0 2
  %479 = vperm.xlu0 %478, %v422
  %v480 = vpop.permute.xlu0 %479
  %v482 = vmul.f32 %v480, %v477
  %v483 = vmul.f32 %v480, %v476
  %v484 = vmul.f32 %v480, %v475
  %v485 = vmul.f32 %v480, %v474
  %v486 = vadd.f32 %v482, 0.0
  %v487 = vadd.f32 %v483, 0.0
  %v488 = vadd.f32 %v484, 0.0
  %v489 = vadd.f32 %v485, 0.0
  %490 = vrot.lane.b32.xlu0 %v280, 3
  %v491 = vpop.permute.xlu0 %490
  %492 = vrot.lane.b32.xlu0 %v282, 3
  %v493 = vpop.permute.xlu0 %492
  %494 = vrot.lane.b32.xlu0 %v351, 3
  %v495 = vpop.permute.xlu0 %494
  %496 = vrot.lane.b32.xlu0 %v353, 3
  %v497 = vpop.permute.xlu0 %496
  %vm498 = vcmp.lt.s32.totalorder %v447, 3
  %v499 = vsel %vm498, %v495, %v497
  %v500 = vsel %vm498, %v493, %v495
  %v501 = vsel %vm498, %v491, %v493
  %v502 = vsel %vm498, %v497, %v491
  %503 = vset.pattern.permute.xlu0 3
  %504 = vperm.xlu0 %503, %v422
  %v505 = vpop.permute.xlu0 %504
  %v507 = vmul.f32 %v505, %v502
  %v508 = vmul.f32 %v505, %v501
  %v509 = vmul.f32 %v505, %v500
  %v510 = vmul.f32 %v505, %v499
  %v511 = vadd.f32 %v507, 0.0
  %v512 = vadd.f32 %v508, 0.0
  %v513 = vadd.f32 %v509, 0.0
  %v514 = vadd.f32 %v510, 0.0
  %515 = vrot.lane.b32.xlu0 %v280, 4
  %v516 = vpop.permute.xlu0 %515
  %517 = vrot.lane.b32.xlu0 %v282, 4
  %v518 = vpop.permute.xlu0 %517
  %519 = vrot.lane.b32.xlu0 %v351, 4
  %v520 = vpop.permute.xlu0 %519
  %521 = vrot.lane.b32.xlu0 %v353, 4
  %v522 = vpop.permute.xlu0 %521
  %vm523 = vcmp.lt.s32.totalorder %v447, 4
  %v524 = vsel %vm523, %v520, %v522
  %v525 = vsel %vm523, %v518, %v520
  %v526 = vsel %vm523, %v516, %v518
  %v527 = vsel %vm523, %v522, %v516
  %528 = vset.pattern.permute.xlu0 4
  %529 = vperm.xlu0 %528, %v422
  %v530 = vpop.permute.xlu0 %529
  %v532 = vmul.f32 %v530, %v527
  %v533 = vmul.f32 %v530, %v526
  %v534 = vmul.f32 %v530, %v525
  %v535 = vmul.f32 %v530, %v524
  %v536 = vadd.f32 %v434, %v532
  %v537 = vadd.f32 %v435, %v533
  %v538 = vadd.f32 %v436, %v534
  %v539 = vadd.f32 %v437, %v535
  %540 = vrot.lane.b32.xlu0 %v280, 5
  %v541 = vpop.permute.xlu0 %540
  %542 = vrot.lane.b32.xlu0 %v282, 5
  %v543 = vpop.permute.xlu0 %542
  %544 = vrot.lane.b32.xlu0 %v351, 5
  %v545 = vpop.permute.xlu0 %544
  %546 = vrot.lane.b32.xlu0 %v353, 5
  %v547 = vpop.permute.xlu0 %546
  %vm548 = vcmp.lt.s32.totalorder %v447, 5
  %v549 = vsel %vm548, %v545, %v547
  %v550 = vsel %vm548, %v543, %v545
  %v551 = vsel %vm548, %v541, %v543
  %v552 = vsel %vm548, %v547, %v541
  %553 = vset.pattern.permute.xlu0 5
  %554 = vperm.xlu0 %553, %v422
  %v555 = vpop.permute.xlu0 %554
  %v557 = vmul.f32 %v555, %v552
  %v558 = vmul.f32 %v555, %v551
  %v559 = vmul.f32 %v555, %v550
  %v560 = vmul.f32 %v555, %v549
  %v561 = vadd.f32 %v461, %v557
  %v562 = vadd.f32 %v462, %v558
  %v563 = vadd.f32 %v463, %v559
  %v564 = vadd.f32 %v464, %v560
  %565 = vrot.lane.b32.xlu0 %v280, 6
  %v566 = vpop.permute.xlu0 %565
  %567 = vrot.lane.b32.xlu0 %v282, 6
  %v568 = vpop.permute.xlu0 %567
  %569 = vrot.lane.b32.xlu0 %v351, 6
  %v570 = vpop.permute.xlu0 %569
  %571 = vrot.lane.b32.xlu0 %v353, 6
  %v572 = vpop.permute.xlu0 %571
  %vm573 = vcmp.lt.s32.totalorder %v447, 6
  %v574 = vsel %vm573, %v570, %v572
  %v575 = vsel %vm573, %v568, %v570
  %v576 = vsel %vm573, %v566, %v568
  %v577 = vsel %vm573, %v572, %v566
  %578 = vset.pattern.permute.xlu0 6
  %579 = vperm.xlu0 %578, %v422
  %v580 = vpop.permute.xlu0 %579
  %v582 = vmul.f32 %v580, %v577
  %v583 = vmul.f32 %v580, %v576
  %v584 = vmul.f32 %v580, %v575
  %v585 = vmul.f32 %v580, %v574
  %v586 = vadd.f32 %v486, %v582
  %v587 = vadd.f32 %v487, %v583
  %v588 = vadd.f32 %v488, %v584
  %v589 = vadd.f32 %v489, %v585
  %590 = vrot.lane.b32.xlu0 %v280, 21
  %v591 = vpop.permute.xlu0 %590
  %592 = vrot.lane.b32.xlu0 %v282, 21
  %v593 = vpop.permute.xlu0 %592
  %594 = vrot.lane.b32.xlu0 %v351, 21
  %v595 = vpop.permute.xlu0 %594
  %596 = vrot.lane.b32.xlu0 %v353, 21
  %v597 = vpop.permute.xlu0 %596
  %vm598 = vcmp.lt.s32.totalorder %v447, 21
  %v599 = vsel %vm598, %v595, %v597
  %v600 = vsel %vm598, %v593, %v595
  %v601 = vsel %vm598, %v591, %v593
  %v602 = vsel %vm598, %v597, %v591
  %603 = vset.pattern.permute.xlu0 7
  %604 = vperm.xlu0 %603, %v422
  %v605 = vpop.permute.xlu0 %604
  %v607 = vmul.f32 %v605, %v602
  %v608 = vmul.f32 %v605, %v601
  %v609 = vmul.f32 %v605, %v600
  %v610 = vmul.f32 %v605, %v599
  %v611 = vadd.f32 %v511, %v607
  %v612 = vadd.f32 %v512, %v608
  %v613 = vadd.f32 %v513, %v609
  %v614 = vadd.f32 %v514, %v610
  %615 = vrot.lane.b32.xlu0 %v280, 22
  %v616 = vpop.permute.xlu0 %615
  %617 = vrot.lane.b32.xlu0 %v282, 22
  %v618 = vpop.permute.xlu0 %617
  %619 = vrot.lane.b32.xlu0 %v351, 22
  %v620 = vpop.permute.xlu0 %619
  %621 = vrot.lane.b32.xlu0 %v353, 22
  %v622 = vpop.permute.xlu0 %621
  %vm623 = vcmp.lt.s32.totalorder %v447, 22
  %v624 = vsel %vm623, %v620, %v622
  %v625 = vsel %vm623, %v618, %v620
  %v626 = vsel %vm623, %v616, %v618
  %v627 = vsel %vm623, %v622, %v616
  %628 = vset.pattern.permute.xlu0 8
  %629 = vperm.xlu0 %628, %v422
  %v630 = vpop.permute.xlu0 %629
  %v632 = vmul.f32 %v630, %v627
  %v633 = vmul.f32 %v630, %v626
  %v634 = vmul.f32 %v630, %v625
  %v635 = vmul.f32 %v630, %v624
  %v636 = vadd.f32 %v536, %v632
  %v637 = vadd.f32 %v537, %v633
  %v638 = vadd.f32 %v538, %v634
  %v639 = vadd.f32 %v539, %v635
  %640 = vrot.lane.b32.xlu0 %v280, 23
  %v641 = vpop.permute.xlu0 %640
  %642 = vrot.lane.b32.xlu0 %v282, 23
  %v643 = vpop.permute.xlu0 %642
  %644 = vrot.lane.b32.xlu0 %v351, 23
  %v645 = vpop.permute.xlu0 %644
  %646 = vrot.lane.b32.xlu0 %v353, 23
  %v647 = vpop.permute.xlu0 %646
  %vm648 = vcmp.lt.s32.totalorder %v447, 23
  %v649 = vsel %vm648, %v645, %v647
  %v650 = vsel %vm648, %v643, %v645
  %v651 = vsel %vm648, %v641, %v643
  %v652 = vsel %vm648, %v647, %v641
  %653 = vset.pattern.permute.xlu0 9
  %654 = vperm.xlu0 %653, %v422
  %v655 = vpop.permute.xlu0 %654
  %v657 = vmul.f32 %v655, %v652
  %v658 = vmul.f32 %v655, %v651
  %v659 = vmul.f32 %v655, %v650
  %v660 = vmul.f32 %v655, %v649
  %v661 = vadd.f32 %v561, %v657
  %v662 = vadd.f32 %v562, %v658
  %v663 = vadd.f32 %v563, %v659
  %v664 = vadd.f32 %v564, %v660
  %665 = vrot.lane.b32.xlu0 %v280, 24
  %v666 = vpop.permute.xlu0 %665
  %667 = vrot.lane.b32.xlu0 %v282, 24
  %v668 = vpop.permute.xlu0 %667
  %669 = vrot.lane.b32.xlu0 %v351, 24
  %v670 = vpop.permute.xlu0 %669
  %671 = vrot.lane.b32.xlu0 %v353, 24
  %v672 = vpop.permute.xlu0 %671
  %vm673 = vcmp.lt.s32.totalorder %v447, 24
  %v674 = vsel %vm673, %v670, %v672
  %v675 = vsel %vm673, %v668, %v670
  %v676 = vsel %vm673, %v666, %v668
  %v677 = vsel %vm673, %v672, %v666
  %678 = vset.pattern.permute.xlu0 10
  %679 = vperm.xlu0 %678, %v422
  %v680 = vpop.permute.xlu0 %679
  %v682 = vmul.f32 %v680, %v677
  %v683 = vmul.f32 %v680, %v676
  %v684 = vmul.f32 %v680, %v675
  %v685 = vmul.f32 %v680, %v674
  %v686 = vadd.f32 %v586, %v682
  %v687 = vadd.f32 %v587, %v683
  %v688 = vadd.f32 %v588, %v684
  %v689 = vadd.f32 %v589, %v685
  %690 = vrot.lane.b32.xlu0 %v280, 25
  %v691 = vpop.permute.xlu0 %690
  %692 = vrot.lane.b32.xlu0 %v282, 25
  %v693 = vpop.permute.xlu0 %692
  %694 = vrot.lane.b32.xlu0 %v351, 25
  %v695 = vpop.permute.xlu0 %694
  %696 = vrot.lane.b32.xlu0 %v353, 25
  %v697 = vpop.permute.xlu0 %696
  %vm698 = vcmp.lt.s32.totalorder %v447, 25
  %v699 = vsel %vm698, %v695, %v697
  %v700 = vsel %vm698, %v693, %v695
  %v701 = vsel %vm698, %v691, %v693
  %v702 = vsel %vm698, %v697, %v691
  %703 = vset.pattern.permute.xlu0 11
  %704 = vperm.xlu0 %703, %v422
  %v705 = vpop.permute.xlu0 %704
  %v707 = vmul.f32 %v705, %v702
  %v708 = vmul.f32 %v705, %v701
  %v709 = vmul.f32 %v705, %v700
  %v710 = vmul.f32 %v705, %v699
  %v711 = vadd.f32 %v611, %v707
  %v712 = vadd.f32 %v612, %v708
  %v713 = vadd.f32 %v613, %v709
  %v714 = vadd.f32 %v614, %v710
  %715 = vrot.lane.b32.xlu0 %v280, 26
  %v716 = vpop.permute.xlu0 %715
  %717 = vrot.lane.b32.xlu0 %v282, 26
  %v718 = vpop.permute.xlu0 %717
  %719 = vrot.lane.b32.xlu0 %v351, 26
  %v720 = vpop.permute.xlu0 %719
  %721 = vrot.lane.b32.xlu0 %v353, 26
  %v722 = vpop.permute.xlu0 %721
  %vm723 = vcmp.lt.s32.totalorder %v447, 26
  %v724 = vsel %vm723, %v720, %v722
  %v725 = vsel %vm723, %v718, %v720
  %v726 = vsel %vm723, %v716, %v718
  %v727 = vsel %vm723, %v722, %v716
  %728 = vset.pattern.permute.xlu0 12
  %729 = vperm.xlu0 %728, %v422
  %v730 = vpop.permute.xlu0 %729
  %v732 = vmul.f32 %v730, %v727
  %v733 = vmul.f32 %v730, %v726
  %v734 = vmul.f32 %v730, %v725
  %v735 = vmul.f32 %v730, %v724
  %v736 = vadd.f32 %v636, %v732
  %v737 = vadd.f32 %v637, %v733
  %v738 = vadd.f32 %v638, %v734
  %v739 = vadd.f32 %v639, %v735
  %740 = vrot.lane.b32.xlu0 %v280, 27
  %v741 = vpop.permute.xlu0 %740
  %742 = vrot.lane.b32.xlu0 %v282, 27
  %v743 = vpop.permute.xlu0 %742
  %744 = vrot.lane.b32.xlu0 %v351, 27
  %v745 = vpop.permute.xlu0 %744
  %746 = vrot.lane.b32.xlu0 %v353, 27
  %v747 = vpop.permute.xlu0 %746
  %vm748 = vcmp.lt.s32.totalorder %v447, 27
  %v749 = vsel %vm748, %v745, %v747
  %v750 = vsel %vm748, %v743, %v745
  %v751 = vsel %vm748, %v741, %v743
  %v752 = vsel %vm748, %v747, %v741
  %753 = vset.pattern.permute.xlu0 13
  %754 = vperm.xlu0 %753, %v422
  %v755 = vpop.permute.xlu0 %754
  %v757 = vmul.f32 %v755, %v752
  %v758 = vmul.f32 %v755, %v751
  %v759 = vmul.f32 %v755, %v750
  %v760 = vmul.f32 %v755, %v749
  %v761 = vadd.f32 %v661, %v757
  %v762 = vadd.f32 %v662, %v758
  %v763 = vadd.f32 %v663, %v759
  %v764 = vadd.f32 %v664, %v760
  %765 = vrot.lane.b32.xlu0 %v280, 42
  %v766 = vpop.permute.xlu0 %765
  %767 = vrot.lane.b32.xlu0 %v282, 42
  %v768 = vpop.permute.xlu0 %767
  %769 = vrot.lane.b32.xlu0 %v351, 42
  %v770 = vpop.permute.xlu0 %769
  %771 = vrot.lane.b32.xlu0 %v353, 42
  %v772 = vpop.permute.xlu0 %771
  %vm773 = vcmp.lt.s32.totalorder %v447, 42
  %v774 = vsel %vm773, %v770, %v772
  %v775 = vsel %vm773, %v768, %v770
  %v776 = vsel %vm773, %v766, %v768
  %v777 = vsel %vm773, %v772, %v766
  %778 = vset.pattern.permute.xlu0 14
  %779 = vperm.xlu0 %778, %v422
  %v780 = vpop.permute.xlu0 %779
  %v782 = vmul.f32 %v780, %v777
  %v783 = vmul.f32 %v780, %v776
  %v784 = vmul.f32 %v780, %v775
  %v785 = vmul.f32 %v780, %v774
  %v786 = vadd.f32 %v686, %v782
  %v787 = vadd.f32 %v687, %v783
  %v788 = vadd.f32 %v688, %v784
  %v789 = vadd.f32 %v689, %v785
  %790 = vrot.lane.b32.xlu0 %v280, 43
  %v791 = vpop.permute.xlu0 %790
  %792 = vrot.lane.b32.xlu0 %v282, 43
  %v793 = vpop.permute.xlu0 %792
  %794 = vrot.lane.b32.xlu0 %v351, 43
  %v795 = vpop.permute.xlu0 %794
  %796 = vrot.lane.b32.xlu0 %v353, 43
  %v797 = vpop.permute.xlu0 %796
  %vm798 = vcmp.lt.s32.totalorder %v447, 43
  %v799 = vsel %vm798, %v795, %v797
  %v800 = vsel %vm798, %v793, %v795
  %v801 = vsel %vm798, %v791, %v793
  %v802 = vsel %vm798, %v797, %v791
  %803 = vset.pattern.permute.xlu0 15
  %804 = vperm.xlu0 %803, %v422
  %v805 = vpop.permute.xlu0 %804
  %v807 = vmul.f32 %v805, %v802
  %v808 = vmul.f32 %v805, %v801
  %v809 = vmul.f32 %v805, %v800
  %v810 = vmul.f32 %v805, %v799
  %v811 = vadd.f32 %v711, %v807
  %v812 = vadd.f32 %v712, %v808
  %v813 = vadd.f32 %v713, %v809
  %v814 = vadd.f32 %v714, %v810
  %815 = vrot.lane.b32.xlu0 %v280, 44
  %v816 = vpop.permute.xlu0 %815
  %817 = vrot.lane.b32.xlu0 %v282, 44
  %v818 = vpop.permute.xlu0 %817
  %819 = vrot.lane.b32.xlu0 %v351, 44
  %v820 = vpop.permute.xlu0 %819
  %821 = vrot.lane.b32.xlu0 %v353, 44
  %v822 = vpop.permute.xlu0 %821
  %vm823 = vcmp.lt.s32.totalorder %v447, 44
  %v824 = vsel %vm823, %v820, %v822
  %v825 = vsel %vm823, %v818, %v820
  %v826 = vsel %vm823, %v816, %v818
  %v827 = vsel %vm823, %v822, %v816
  %828 = vset.pattern.permute.xlu0 16
  %829 = vperm.xlu0 %828, %v422
  %v830 = vpop.permute.xlu0 %829
  %v832 = vmul.f32 %v830, %v827
  %v833 = vmul.f32 %v830, %v826
  %v834 = vmul.f32 %v830, %v825
  %v835 = vmul.f32 %v830, %v824
  %v836 = vadd.f32 %v736, %v832
  %v837 = vadd.f32 %v737, %v833
  %v838 = vadd.f32 %v738, %v834
  %v839 = vadd.f32 %v739, %v835
  %840 = vrot.lane.b32.xlu0 %v280, 45
  %v841 = vpop.permute.xlu0 %840
  %842 = vrot.lane.b32.xlu0 %v282, 45
  %v843 = vpop.permute.xlu0 %842
  %844 = vrot.lane.b32.xlu0 %v351, 45
  %v845 = vpop.permute.xlu0 %844
  %846 = vrot.lane.b32.xlu0 %v353, 45
  %v847 = vpop.permute.xlu0 %846
  %vm848 = vcmp.lt.s32.totalorder %v447, 45
  %v849 = vsel %vm848, %v845, %v847
  %v850 = vsel %vm848, %v843, %v845
  %v851 = vsel %vm848, %v841, %v843
  %v852 = vsel %vm848, %v847, %v841
  %853 = vset.pattern.permute.xlu0 17
  %854 = vperm.xlu0 %853, %v422
  %v855 = vpop.permute.xlu0 %854
  %v857 = vmul.f32 %v855, %v852
  %v858 = vmul.f32 %v855, %v851
  %v859 = vmul.f32 %v855, %v850
  %v860 = vmul.f32 %v855, %v849
  %v861 = vadd.f32 %v761, %v857
  %v862 = vadd.f32 %v762, %v858
  %v863 = vadd.f32 %v763, %v859
  %v864 = vadd.f32 %v764, %v860
  %865 = vrot.lane.b32.xlu0 %v280, 46
  %v866 = vpop.permute.xlu0 %865
  %867 = vrot.lane.b32.xlu0 %v282, 46
  %v868 = vpop.permute.xlu0 %867
  %869 = vrot.lane.b32.xlu0 %v351, 46
  %v870 = vpop.permute.xlu0 %869
  %871 = vrot.lane.b32.xlu0 %v353, 46
  %v872 = vpop.permute.xlu0 %871
  %vm873 = vcmp.lt.s32.totalorder %v447, 46
  %v874 = vsel %vm873, %v870, %v872
  %v875 = vsel %vm873, %v868, %v870
  %v876 = vsel %vm873, %v866, %v868
  %v877 = vsel %vm873, %v872, %v866
  %878 = vset.pattern.permute.xlu0 18
  %879 = vperm.xlu0 %878, %v422
  %v880 = vpop.permute.xlu0 %879
  %v882 = vmul.f32 %v880, %v877
  %v883 = vmul.f32 %v880, %v876
  %v884 = vmul.f32 %v880, %v875
  %v885 = vmul.f32 %v880, %v874
  %v886 = vadd.f32 %v786, %v882
  %v887 = vadd.f32 %v787, %v883
  %v888 = vadd.f32 %v788, %v884
  %v889 = vadd.f32 %v789, %v885
  %890 = vrot.lane.b32.xlu0 %v280, 47
  %v891 = vpop.permute.xlu0 %890
  %892 = vrot.lane.b32.xlu0 %v282, 47
  %v893 = vpop.permute.xlu0 %892
  %894 = vrot.lane.b32.xlu0 %v351, 47
  %v895 = vpop.permute.xlu0 %894
  %896 = vrot.lane.b32.xlu0 %v353, 47
  %v897 = vpop.permute.xlu0 %896
  %vm898 = vcmp.lt.s32.totalorder %v447, 47
  %v899 = vsel %vm898, %v895, %v897
  %v900 = vsel %vm898, %v893, %v895
  %v901 = vsel %vm898, %v891, %v893
  %v902 = vsel %vm898, %v897, %v891
  %903 = vset.pattern.permute.xlu0 19
  %904 = vperm.xlu0 %903, %v422
  %v905 = vpop.permute.xlu0 %904
  %v907 = vmul.f32 %v905, %v902
  %v908 = vmul.f32 %v905, %v901
  %v909 = vmul.f32 %v905, %v900
  %v910 = vmul.f32 %v905, %v899
  %v911 = vadd.f32 %v811, %v907
  %v912 = vadd.f32 %v812, %v908
  %v913 = vadd.f32 %v813, %v909
  %v914 = vadd.f32 %v814, %v910
  %915 = vrot.lane.b32.xlu0 %v280, 48
  %v916 = vpop.permute.xlu0 %915
  %917 = vrot.lane.b32.xlu0 %v282, 48
  %v918 = vpop.permute.xlu0 %917
  %919 = vrot.lane.b32.xlu0 %v351, 48
  %v920 = vpop.permute.xlu0 %919
  %921 = vrot.lane.b32.xlu0 %v353, 48
  %v922 = vpop.permute.xlu0 %921
  %vm923 = vcmp.lt.s32.totalorder %v447, 48
  %v924 = vsel %vm923, %v920, %v922
  %v925 = vsel %vm923, %v918, %v920
  %v926 = vsel %vm923, %v916, %v918
  %v927 = vsel %vm923, %v922, %v916
  %928 = vset.pattern.permute.xlu0 20
  %929 = vperm.xlu0 %928, %v422
  %v930 = vpop.permute.xlu0 %929
  %v932 = vmul.f32 %v930, %v927
  %v933 = vmul.f32 %v930, %v926
  %v934 = vmul.f32 %v930, %v925
  %v935 = vmul.f32 %v930, %v924
  %v936 = vadd.f32 %v836, %v932
  %v937 = vadd.f32 %v837, %v933
  %v938 = vadd.f32 %v838, %v934
  %v939 = vadd.f32 %v839, %v935
  %940 = vrot.lane.b32.xlu0 %v280, 63
  %v941 = vpop.permute.xlu0 %940
  %942 = vrot.lane.b32.xlu0 %v282, 63
  %v943 = vpop.permute.xlu0 %942
  %944 = vrot.lane.b32.xlu0 %v351, 63
  %v945 = vpop.permute.xlu0 %944
  %946 = vrot.lane.b32.xlu0 %v353, 63
  %v947 = vpop.permute.xlu0 %946
  %vm948 = vcmp.lt.s32.totalorder %v447, 63
  %v949 = vsel %vm948, %v945, %v947
  %v950 = vsel %vm948, %v943, %v945
  %v951 = vsel %vm948, %v941, %v943
  %v952 = vsel %vm948, %v947, %v941
  %953 = vset.pattern.permute.xlu0 21
  %954 = vperm.xlu0 %953, %v422
  %v955 = vpop.permute.xlu0 %954
  %v957 = vmul.f32 %v955, %v952
  %v958 = vmul.f32 %v955, %v951
  %v959 = vmul.f32 %v955, %v950
  %v960 = vmul.f32 %v955, %v949
  %v961 = vadd.f32 %v861, %v957
  %v962 = vadd.f32 %v862, %v958
  %v963 = vadd.f32 %v863, %v959
  %v964 = vadd.f32 %v864, %v960
  %965 = vrot.lane.b32.xlu0 %v280, 64
  %v966 = vpop.permute.xlu0 %965
  %967 = vrot.lane.b32.xlu0 %v282, 64
  %v968 = vpop.permute.xlu0 %967
  %969 = vrot.lane.b32.xlu0 %v351, 64
  %v970 = vpop.permute.xlu0 %969
  %971 = vrot.lane.b32.xlu0 %v353, 64
  %v972 = vpop.permute.xlu0 %971
  %vm973 = vcmp.lt.s32.totalorder %v447, 64
  %v974 = vsel %vm973, %v970, %v972
  %v975 = vsel %vm973, %v968, %v970
  %v976 = vsel %vm973, %v966, %v968
  %v977 = vsel %vm973, %v972, %v966
  %978 = vset.pattern.permute.xlu0 22
  %979 = vperm.xlu0 %978, %v422
  %v980 = vpop.permute.xlu0 %979
  %v982 = vmul.f32 %v980, %v977
  %v983 = vmul.f32 %v980, %v976
  %v984 = vmul.f32 %v980, %v975
  %v985 = vmul.f32 %v980, %v974
  %v986 = vadd.f32 %v886, %v982
  %v987 = vadd.f32 %v887, %v983
  %v988 = vadd.f32 %v888, %v984
  %v989 = vadd.f32 %v889, %v985
  %990 = vrot.lane.b32.xlu0 %v280, 65
  %v991 = vpop.permute.xlu0 %990
  %992 = vrot.lane.b32.xlu0 %v282, 65
  %v993 = vpop.permute.xlu0 %992
  %994 = vrot.lane.b32.xlu0 %v351, 65
  %v995 = vpop.permute.xlu0 %994
  %996 = vrot.lane.b32.xlu0 %v353, 65
  %v997 = vpop.permute.xlu0 %996
  %vm998 = vcmp.lt.s32.totalorder %v447, 65
  %v999 = vsel %vm998, %v995, %v997
  %v1000 = vsel %vm998, %v993, %v995
  %v1001 = vsel %vm998, %v991, %v993
  %v1002 = vsel %vm998, %v997, %v991
  %1003 = vset.pattern.permute.xlu0 23
  %1004 = vperm.xlu0 %1003, %v422
  %v1005 = vpop.permute.xlu0 %1004
  %v1007 = vmul.f32 %v1005, %v1002
  %v1008 = vmul.f32 %v1005, %v1001
  %v1009 = vmul.f32 %v1005, %v1000
  %v1010 = vmul.f32 %v1005, %v999
  %v1011 = vadd.f32 %v911, %v1007
  %v1012 = vadd.f32 %v912, %v1008
  %v1013 = vadd.f32 %v913, %v1009
  %v1014 = vadd.f32 %v914, %v1010
  %1015 = vrot.lane.b32.xlu0 %v280, 66
  %v1016 = vpop.permute.xlu0 %1015
  %1017 = vrot.lane.b32.xlu0 %v282, 66
  %v1018 = vpop.permute.xlu0 %1017
  %1019 = vrot.lane.b32.xlu0 %v351, 66
  %v1020 = vpop.permute.xlu0 %1019
  %1021 = vrot.lane.b32.xlu0 %v353, 66
  %v1022 = vpop.permute.xlu0 %1021
  %vm1023 = vcmp.lt.s32.totalorder %v447, 66
  %v1024 = vsel %vm1023, %v1020, %v1022
  %v1025 = vsel %vm1023, %v1018, %v1020
  %v1026 = vsel %vm1023, %v1016, %v1018
  %v1027 = vsel %vm1023, %v1022, %v1016
  %1028 = vset.pattern.permute.xlu0 24
  %1029 = vperm.xlu0 %1028, %v422
  %v1030 = vpop.permute.xlu0 %1029
  %v1032 = vmul.f32 %v1030, %v1027
  %v1033 = vmul.f32 %v1030, %v1026
  %v1034 = vmul.f32 %v1030, %v1025
  %v1035 = vmul.f32 %v1030, %v1024
  %v1036 = vadd.f32 %v936, %v1032
  %v1037 = vadd.f32 %v937, %v1033
  %v1038 = vadd.f32 %v938, %v1034
  %v1039 = vadd.f32 %v939, %v1035
  %1040 = vrot.lane.b32.xlu0 %v280, 67
  %v1041 = vpop.permute.xlu0 %1040
  %1042 = vrot.lane.b32.xlu0 %v282, 67
  %v1043 = vpop.permute.xlu0 %1042
  %1044 = vrot.lane.b32.xlu0 %v351, 67
  %v1045 = vpop.permute.xlu0 %1044
  %1046 = vrot.lane.b32.xlu0 %v353, 67
  %v1047 = vpop.permute.xlu0 %1046
  %vm1048 = vcmp.lt.s32.totalorder %v447, 67
  %v1049 = vsel %vm1048, %v1045, %v1047
  %v1050 = vsel %vm1048, %v1043, %v1045
  %v1051 = vsel %vm1048, %v1041, %v1043
  %v1052 = vsel %vm1048, %v1047, %v1041
  %1053 = vset.pattern.permute.xlu0 25
  %1054 = vperm.xlu0 %1053, %v422
  %v1055 = vpop.permute.xlu0 %1054
  %v1057 = vmul.f32 %v1055, %v1052
  %v1058 = vmul.f32 %v1055, %v1051
  %v1059 = vmul.f32 %v1055, %v1050
  %v1060 = vmul.f32 %v1055, %v1049
  %v1061 = vadd.f32 %v961, %v1057
  %v1062 = vadd.f32 %v962, %v1058
  %v1063 = vadd.f32 %v963, %v1059
  %v1064 = vadd.f32 %v964, %v1060
  %1065 = vrot.lane.b32.xlu0 %v280, 68
  %v1066 = vpop.permute.xlu0 %1065
  %1067 = vrot.lane.b32.xlu0 %v282, 68
  %v1068 = vpop.permute.xlu0 %1067
  %1069 = vrot.lane.b32.xlu0 %v351, 68
  %v1070 = vpop.permute.xlu0 %1069
  %1071 = vrot.lane.b32.xlu0 %v353, 68
  %v1072 = vpop.permute.xlu0 %1071
  %vm1073 = vcmp.lt.s32.totalorder %v447, 68
  %v1074 = vsel %vm1073, %v1070, %v1072
  %v1075 = vsel %vm1073, %v1068, %v1070
  %v1076 = vsel %vm1073, %v1066, %v1068
  %v1077 = vsel %vm1073, %v1072, %v1066
  %1078 = vset.pattern.permute.xlu0 26
  %1079 = vperm.xlu0 %1078, %v422
  %v1080 = vpop.permute.xlu0 %1079
  %v1082 = vmul.f32 %v1080, %v1077
  %v1083 = vmul.f32 %v1080, %v1076
  %v1084 = vmul.f32 %v1080, %v1075
  %v1085 = vmul.f32 %v1080, %v1074
  %v1086 = vadd.f32 %v986, %v1082
  %v1087 = vadd.f32 %v987, %v1083
  %v1088 = vadd.f32 %v988, %v1084
  %v1089 = vadd.f32 %v989, %v1085
  %1090 = vrot.lane.b32.xlu0 %v280, 69
  %v1091 = vpop.permute.xlu0 %1090
  %1092 = vrot.lane.b32.xlu0 %v282, 69
  %v1093 = vpop.permute.xlu0 %1092
  %1094 = vrot.lane.b32.xlu0 %v351, 69
  %v1095 = vpop.permute.xlu0 %1094
  %1096 = vrot.lane.b32.xlu0 %v353, 69
  %v1097 = vpop.permute.xlu0 %1096
  %vm1098 = vcmp.lt.s32.totalorder %v447, 69
  %v1099 = vsel %vm1098, %v1095, %v1097
  %v1100 = vsel %vm1098, %v1093, %v1095
  %v1101 = vsel %vm1098, %v1091, %v1093
  %v1102 = vsel %vm1098, %v1097, %v1091
  %1103 = vset.pattern.permute.xlu0 27
  %1104 = vperm.xlu0 %1103, %v422
  %v1105 = vpop.permute.xlu0 %1104
  %v1107 = vmul.f32 %v1105, %v1102
  %v1108 = vmul.f32 %v1105, %v1101
  %v1109 = vmul.f32 %v1105, %v1100
  %v1110 = vmul.f32 %v1105, %v1099
  %v1111 = vadd.f32 %v1011, %v1107
  %v1112 = vadd.f32 %v1012, %v1108
  %v1113 = vadd.f32 %v1013, %v1109
  %v1114 = vadd.f32 %v1014, %v1110
  %1115 = vrot.lane.b32.xlu0 %v280, 84
  %v1116 = vpop.permute.xlu0 %1115
  %1117 = vrot.lane.b32.xlu0 %v282, 84
  %v1118 = vpop.permute.xlu0 %1117
  %1119 = vrot.lane.b32.xlu0 %v351, 84
  %v1120 = vpop.permute.xlu0 %1119
  %1121 = vrot.lane.b32.xlu0 %v353, 84
  %v1122 = vpop.permute.xlu0 %1121
  %vm1123 = vcmp.lt.s32.totalorder %v447, 84
  %v1124 = vsel %vm1123, %v1120, %v1122
  %v1125 = vsel %vm1123, %v1118, %v1120
  %v1126 = vsel %vm1123, %v1116, %v1118
  %v1127 = vsel %vm1123, %v1122, %v1116
  %1128 = vset.pattern.permute.xlu0 28
  %1129 = vperm.xlu0 %1128, %v422
  %v1130 = vpop.permute.xlu0 %1129
  %v1132 = vmul.f32 %v1130, %v1127
  %v1133 = vmul.f32 %v1130, %v1126
  %v1134 = vmul.f32 %v1130, %v1125
  %v1135 = vmul.f32 %v1130, %v1124
  %v1136 = vadd.f32 %v1036, %v1132
  %v1137 = vadd.f32 %v1037, %v1133
  %v1138 = vadd.f32 %v1038, %v1134
  %v1139 = vadd.f32 %v1039, %v1135
  %1140 = vrot.lane.b32.xlu0 %v280, 85
  %v1141 = vpop.permute.xlu0 %1140
  %1142 = vrot.lane.b32.xlu0 %v282, 85
  %v1143 = vpop.permute.xlu0 %1142
  %1144 = vrot.lane.b32.xlu0 %v351, 85
  %v1145 = vpop.permute.xlu0 %1144
  %1146 = vrot.lane.b32.xlu0 %v353, 85
  %v1147 = vpop.permute.xlu0 %1146
  %vm1148 = vcmp.lt.s32.totalorder %v447, 85
  %v1149 = vsel %vm1148, %v1145, %v1147
  %v1150 = vsel %vm1148, %v1143, %v1145
  %v1151 = vsel %vm1148, %v1141, %v1143
  %v1152 = vsel %vm1148, %v1147, %v1141
  %1153 = vset.pattern.permute.xlu0 29
  %1154 = vperm.xlu0 %1153, %v422
  %v1155 = vpop.permute.xlu0 %1154
  %v1157 = vmul.f32 %v1155, %v1152
  %v1158 = vmul.f32 %v1155, %v1151
  %v1159 = vmul.f32 %v1155, %v1150
  %v1160 = vmul.f32 %v1155, %v1149
  %v1161 = vadd.f32 %v1061, %v1157
  %v1162 = vadd.f32 %v1062, %v1158
  %v1163 = vadd.f32 %v1063, %v1159
  %v1164 = vadd.f32 %v1064, %v1160
  %1165 = vrot.lane.b32.xlu0 %v280, 86
  %v1166 = vpop.permute.xlu0 %1165
  %1167 = vrot.lane.b32.xlu0 %v282, 86
  %v1168 = vpop.permute.xlu0 %1167
  %1169 = vrot.lane.b32.xlu0 %v351, 86
  %v1170 = vpop.permute.xlu0 %1169
  %1171 = vrot.lane.b32.xlu0 %v353, 86
  %v1172 = vpop.permute.xlu0 %1171
  %vm1173 = vcmp.lt.s32.totalorder %v447, 86
  %v1174 = vsel %vm1173, %v1170, %v1172
  %v1175 = vsel %vm1173, %v1168, %v1170
  %v1176 = vsel %vm1173, %v1166, %v1168
  %v1177 = vsel %vm1173, %v1172, %v1166
  %1178 = vset.pattern.permute.xlu0 30
  %1179 = vperm.xlu0 %1178, %v422
  %v1180 = vpop.permute.xlu0 %1179
  %v1182 = vmul.f32 %v1180, %v1177
  %v1183 = vmul.f32 %v1180, %v1176
  %v1184 = vmul.f32 %v1180, %v1175
  %v1185 = vmul.f32 %v1180, %v1174
  %v1186 = vadd.f32 %v1086, %v1182
  %v1187 = vadd.f32 %v1087, %v1183
  %v1188 = vadd.f32 %v1088, %v1184
  %v1189 = vadd.f32 %v1089, %v1185
  %1190 = vrot.lane.b32.xlu0 %v280, 87
  %v1191 = vpop.permute.xlu0 %1190
  %1192 = vrot.lane.b32.xlu0 %v282, 87
  %v1193 = vpop.permute.xlu0 %1192
  %1194 = vrot.lane.b32.xlu0 %v351, 87
  %v1195 = vpop.permute.xlu0 %1194
  %1196 = vrot.lane.b32.xlu0 %v353, 87
  %v1197 = vpop.permute.xlu0 %1196
  %vm1198 = vcmp.lt.s32.totalorder %v447, 87
  %v1199 = vsel %vm1198, %v1195, %v1197
  %v1200 = vsel %vm1198, %v1193, %v1195
  %v1201 = vsel %vm1198, %v1191, %v1193
  %v1202 = vsel %vm1198, %v1197, %v1191
  %1203 = vset.pattern.permute.xlu0 31
  %1204 = vperm.xlu0 %1203, %v422
  %v1205 = vpop.permute.xlu0 %1204
  %v1207 = vmul.f32 %v1205, %v1202
  %v1208 = vmul.f32 %v1205, %v1201
  %v1209 = vmul.f32 %v1205, %v1200
  %v1210 = vmul.f32 %v1205, %v1199
  %v1211 = vadd.f32 %v1111, %v1207
  %v1212 = vadd.f32 %v1112, %v1208
  %v1213 = vadd.f32 %v1113, %v1209
  %v1214 = vadd.f32 %v1114, %v1210
  %1215 = vrot.lane.b32.xlu0 %v280, 88
  %v1216 = vpop.permute.xlu0 %1215
  %1217 = vrot.lane.b32.xlu0 %v282, 88
  %v1218 = vpop.permute.xlu0 %1217
  %1219 = vrot.lane.b32.xlu0 %v351, 88
  %v1220 = vpop.permute.xlu0 %1219
  %1221 = vrot.lane.b32.xlu0 %v353, 88
  %v1222 = vpop.permute.xlu0 %1221
  %vm1223 = vcmp.lt.s32.totalorder %v447, 88
  %v1224 = vsel %vm1223, %v1220, %v1222
  %v1225 = vsel %vm1223, %v1218, %v1220
  %v1226 = vsel %vm1223, %v1216, %v1218
  %v1227 = vsel %vm1223, %v1222, %v1216
  %1228 = vset.pattern.permute.xlu0 32
  %1229 = vperm.xlu0 %1228, %v422
  %v1230 = vpop.permute.xlu0 %1229
  %v1232 = vmul.f32 %v1230, %v1227
  %v1233 = vmul.f32 %v1230, %v1226
  %v1234 = vmul.f32 %v1230, %v1225
  %v1235 = vmul.f32 %v1230, %v1224
  %v1236 = vadd.f32 %v1136, %v1232
  %v1237 = vadd.f32 %v1137, %v1233
  %v1238 = vadd.f32 %v1138, %v1234
  %v1239 = vadd.f32 %v1139, %v1235
  %1240 = vrot.lane.b32.xlu0 %v280, 89
  %v1241 = vpop.permute.xlu0 %1240
  %1242 = vrot.lane.b32.xlu0 %v282, 89
  %v1243 = vpop.permute.xlu0 %1242
  %1244 = vrot.lane.b32.xlu0 %v351, 89
  %v1245 = vpop.permute.xlu0 %1244
  %1246 = vrot.lane.b32.xlu0 %v353, 89
  %v1247 = vpop.permute.xlu0 %1246
  %vm1248 = vcmp.lt.s32.totalorder %v447, 89
  %v1249 = vsel %vm1248, %v1245, %v1247
  %v1250 = vsel %vm1248, %v1243, %v1245
  %v1251 = vsel %vm1248, %v1241, %v1243
  %v1252 = vsel %vm1248, %v1247, %v1241
  %1253 = vset.pattern.permute.xlu0 33
  %1254 = vperm.xlu0 %1253, %v422
  %v1255 = vpop.permute.xlu0 %1254
  %v1257 = vmul.f32 %v1255, %v1252
  %v1258 = vmul.f32 %v1255, %v1251
  %v1259 = vmul.f32 %v1255, %v1250
  %v1260 = vmul.f32 %v1255, %v1249
  %v1261 = vadd.f32 %v1161, %v1257
  %v1262 = vadd.f32 %v1162, %v1258
  %v1263 = vadd.f32 %v1163, %v1259
  %v1264 = vadd.f32 %v1164, %v1260
  %1265 = vrot.lane.b32.xlu0 %v280, 90
  %v1266 = vpop.permute.xlu0 %1265
  %1267 = vrot.lane.b32.xlu0 %v282, 90
  %v1268 = vpop.permute.xlu0 %1267
  %1269 = vrot.lane.b32.xlu0 %v351, 90
  %v1270 = vpop.permute.xlu0 %1269
  %1271 = vrot.lane.b32.xlu0 %v353, 90
  %v1272 = vpop.permute.xlu0 %1271
  %vm1273 = vcmp.lt.s32.totalorder %v447, 90
  %v1274 = vsel %vm1273, %v1270, %v1272
  %v1275 = vsel %vm1273, %v1268, %v1270
  %v1276 = vsel %vm1273, %v1266, %v1268
  %v1277 = vsel %vm1273, %v1272, %v1266
  %1278 = vset.pattern.permute.xlu0 34
  %1279 = vperm.xlu0 %1278, %v422
  %v1280 = vpop.permute.xlu0 %1279
  %v1282 = vmul.f32 %v1280, %v1277
  %v1283 = vmul.f32 %v1280, %v1276
  %v1284 = vmul.f32 %v1280, %v1275
  %v1285 = vmul.f32 %v1280, %v1274
  %v1286 = vadd.f32 %v1186, %v1282
  %v1287 = vadd.f32 %v1187, %v1283
  %v1288 = vadd.f32 %v1188, %v1284
  %v1289 = vadd.f32 %v1189, %v1285
  %1290 = vrot.lane.b32.xlu0 %v280, 105
  %v1291 = vpop.permute.xlu0 %1290
  %1292 = vrot.lane.b32.xlu0 %v282, 105
  %v1293 = vpop.permute.xlu0 %1292
  %1294 = vrot.lane.b32.xlu0 %v351, 105
  %v1295 = vpop.permute.xlu0 %1294
  %1296 = vrot.lane.b32.xlu0 %v353, 105
  %v1297 = vpop.permute.xlu0 %1296
  %vm1298 = vcmp.lt.s32.totalorder %v447, 105
  %v1299 = vsel %vm1298, %v1295, %v1297
  %v1300 = vsel %vm1298, %v1293, %v1295
  %v1301 = vsel %vm1298, %v1291, %v1293
  %v1302 = vsel %vm1298, %v1297, %v1291
  %1303 = vset.pattern.permute.xlu0 35
  %1304 = vperm.xlu0 %1303, %v422
  %v1305 = vpop.permute.xlu0 %1304
  %v1307 = vmul.f32 %v1305, %v1302
  %v1308 = vmul.f32 %v1305, %v1301
  %v1309 = vmul.f32 %v1305, %v1300
  %v1310 = vmul.f32 %v1305, %v1299
  %v1311 = vadd.f32 %v1211, %v1307
  %v1312 = vadd.f32 %v1212, %v1308
  %v1313 = vadd.f32 %v1213, %v1309
  %v1314 = vadd.f32 %v1214, %v1310
  %1315 = vrot.lane.b32.xlu0 %v280, 106
  %v1316 = vpop.permute.xlu0 %1315
  %1317 = vrot.lane.b32.xlu0 %v282, 106
  %v1318 = vpop.permute.xlu0 %1317
  %1319 = vrot.lane.b32.xlu0 %v351, 106
  %v1320 = vpop.permute.xlu0 %1319
  %1321 = vrot.lane.b32.xlu0 %v353, 106
  %v1322 = vpop.permute.xlu0 %1321
  %vm1323 = vcmp.lt.s32.totalorder %v447, 106
  %v1324 = vsel %vm1323, %v1320, %v1322
  %v1325 = vsel %vm1323, %v1318, %v1320
  %v1326 = vsel %vm1323, %v1316, %v1318
  %v1327 = vsel %vm1323, %v1322, %v1316
  %1328 = vset.pattern.permute.xlu0 36
  %1329 = vperm.xlu0 %1328, %v422
  %v1330 = vpop.permute.xlu0 %1329
  %v1332 = vmul.f32 %v1330, %v1327
  %v1333 = vmul.f32 %v1330, %v1326
  %v1334 = vmul.f32 %v1330, %v1325
  %v1335 = vmul.f32 %v1330, %v1324
  %v1336 = vadd.f32 %v1236, %v1332
  %v1337 = vadd.f32 %v1237, %v1333
  %v1338 = vadd.f32 %v1238, %v1334
  %v1339 = vadd.f32 %v1239, %v1335
  %1340 = vrot.lane.b32.xlu0 %v280, 107
  %v1341 = vpop.permute.xlu0 %1340
  %1342 = vrot.lane.b32.xlu0 %v282, 107
  %v1343 = vpop.permute.xlu0 %1342
  %1344 = vrot.lane.b32.xlu0 %v351, 107
  %v1345 = vpop.permute.xlu0 %1344
  %1346 = vrot.lane.b32.xlu0 %v353, 107
  %v1347 = vpop.permute.xlu0 %1346
  %vm1348 = vcmp.lt.s32.totalorder %v447, 107
  %v1349 = vsel %vm1348, %v1345, %v1347
  %v1350 = vsel %vm1348, %v1343, %v1345
  %v1351 = vsel %vm1348, %v1341, %v1343
  %v1352 = vsel %vm1348, %v1347, %v1341
  %1353 = vset.pattern.permute.xlu0 37
  %1354 = vperm.xlu0 %1353, %v422
  %v1355 = vpop.permute.xlu0 %1354
  %v1357 = vmul.f32 %v1355, %v1352
  %v1358 = vmul.f32 %v1355, %v1351
  %v1359 = vmul.f32 %v1355, %v1350
  %v1360 = vmul.f32 %v1355, %v1349
  %v1361 = vadd.f32 %v1261, %v1357
  %v1362 = vadd.f32 %v1262, %v1358
  %v1363 = vadd.f32 %v1263, %v1359
  %v1364 = vadd.f32 %v1264, %v1360
  %1365 = vrot.lane.b32.xlu0 %v280, 108
  %v1366 = vpop.permute.xlu0 %1365
  %1367 = vrot.lane.b32.xlu0 %v282, 108
  %v1368 = vpop.permute.xlu0 %1367
  %1369 = vrot.lane.b32.xlu0 %v351, 108
  %v1370 = vpop.permute.xlu0 %1369
  %1371 = vrot.lane.b32.xlu0 %v353, 108
  %v1372 = vpop.permute.xlu0 %1371
  %vm1373 = vcmp.lt.s32.totalorder %v447, 108
  %v1374 = vsel %vm1373, %v1370, %v1372
  %v1375 = vsel %vm1373, %v1368, %v1370
  %v1376 = vsel %vm1373, %v1366, %v1368
  %v1377 = vsel %vm1373, %v1372, %v1366
  %1378 = vset.pattern.permute.xlu0 38
  %1379 = vperm.xlu0 %1378, %v422
  %v1380 = vpop.permute.xlu0 %1379
  %v1382 = vmul.f32 %v1380, %v1377
  %v1383 = vmul.f32 %v1380, %v1376
  %v1384 = vmul.f32 %v1380, %v1375
  %v1385 = vmul.f32 %v1380, %v1374
  %v1386 = vadd.f32 %v1286, %v1382
  %v1387 = vadd.f32 %v1287, %v1383
  %v1388 = vadd.f32 %v1288, %v1384
  %v1389 = vadd.f32 %v1289, %v1385
  %1390 = vrot.lane.b32.xlu0 %v280, 109
  %v1391 = vpop.permute.xlu0 %1390
  %1392 = vrot.lane.b32.xlu0 %v282, 109
  %v1393 = vpop.permute.xlu0 %1392
  %1394 = vrot.lane.b32.xlu0 %v351, 109
  %v1395 = vpop.permute.xlu0 %1394
  %1396 = vrot.lane.b32.xlu0 %v353, 109
  %v1397 = vpop.permute.xlu0 %1396
  %vm1398 = vcmp.lt.s32.totalorder %v447, 109
  %v1399 = vsel %vm1398, %v1395, %v1397
  %v1400 = vsel %vm1398, %v1393, %v1395
  %v1401 = vsel %vm1398, %v1391, %v1393
  %v1402 = vsel %vm1398, %v1397, %v1391
  %1403 = vset.pattern.permute.xlu0 39
  %1404 = vperm.xlu0 %1403, %v422
  %v1405 = vpop.permute.xlu0 %1404
  %v1407 = vmul.f32 %v1405, %v1402
  %v1408 = vmul.f32 %v1405, %v1401
  %v1409 = vmul.f32 %v1405, %v1400
  %v1410 = vmul.f32 %v1405, %v1399
  %v1411 = vadd.f32 %v1311, %v1407
  %v1412 = vadd.f32 %v1312, %v1408
  %v1413 = vadd.f32 %v1313, %v1409
  %v1414 = vadd.f32 %v1314, %v1410
  %1415 = vrot.lane.b32.xlu0 %v280, 110
  %v1416 = vpop.permute.xlu0 %1415
  %1417 = vrot.lane.b32.xlu0 %v282, 110
  %v1418 = vpop.permute.xlu0 %1417
  %1419 = vrot.lane.b32.xlu0 %v351, 110
  %v1420 = vpop.permute.xlu0 %1419
  %1421 = vrot.lane.b32.xlu0 %v353, 110
  %v1422 = vpop.permute.xlu0 %1421
  %vm1423 = vcmp.lt.s32.totalorder %v447, 110
  %v1424 = vsel %vm1423, %v1420, %v1422
  %v1425 = vsel %vm1423, %v1418, %v1420
  %v1426 = vsel %vm1423, %v1416, %v1418
  %v1427 = vsel %vm1423, %v1422, %v1416
  %1428 = vset.pattern.permute.xlu0 40
  %1429 = vperm.xlu0 %1428, %v422
  %v1430 = vpop.permute.xlu0 %1429
  %v1432 = vmul.f32 %v1430, %v1427
  %v1433 = vmul.f32 %v1430, %v1426
  %v1434 = vmul.f32 %v1430, %v1425
  %v1435 = vmul.f32 %v1430, %v1424
  %v1436 = vadd.f32 %v1336, %v1432
  %v1437 = vadd.f32 %v1337, %v1433
  %v1438 = vadd.f32 %v1338, %v1434
  %v1439 = vadd.f32 %v1339, %v1435
  %1440 = vrot.lane.b32.xlu0 %v280, 111
  %v1441 = vpop.permute.xlu0 %1440
  %1442 = vrot.lane.b32.xlu0 %v282, 111
  %v1443 = vpop.permute.xlu0 %1442
  %1444 = vrot.lane.b32.xlu0 %v351, 111
  %v1445 = vpop.permute.xlu0 %1444
  %1446 = vrot.lane.b32.xlu0 %v353, 111
  %v1447 = vpop.permute.xlu0 %1446
  %vm1448 = vcmp.lt.s32.totalorder %v447, 111
  %v1449 = vsel %vm1448, %v1445, %v1447
  %v1450 = vsel %vm1448, %v1443, %v1445
  %v1451 = vsel %vm1448, %v1441, %v1443
  %v1452 = vsel %vm1448, %v1447, %v1441
  %1453 = vset.pattern.permute.xlu0 41
  %1454 = vperm.xlu0 %1453, %v422
  %v1455 = vpop.permute.xlu0 %1454
  %v1457 = vmul.f32 %v1455, %v1452
  %v1458 = vmul.f32 %v1455, %v1451
  %v1459 = vmul.f32 %v1455, %v1450
  %v1460 = vmul.f32 %v1455, %v1449
  %v1461 = vadd.f32 %v1361, %v1457
  %v1462 = vadd.f32 %v1362, %v1458
  %v1463 = vadd.f32 %v1363, %v1459
  %v1464 = vadd.f32 %v1364, %v1460
  %1465 = vrot.lane.b32.xlu0 %v280, 126
  %v1466 = vpop.permute.xlu0 %1465
  %1467 = vrot.lane.b32.xlu0 %v282, 126
  %v1468 = vpop.permute.xlu0 %1467
  %1469 = vrot.lane.b32.xlu0 %v351, 126
  %v1470 = vpop.permute.xlu0 %1469
  %1471 = vrot.lane.b32.xlu0 %v353, 126
  %v1472 = vpop.permute.xlu0 %1471
  %vm1473 = vcmp.lt.s32.totalorder %v447, 126
  %v1474 = vsel %vm1473, %v1470, %v1472
  %v1475 = vsel %vm1473, %v1468, %v1470
  %v1476 = vsel %vm1473, %v1466, %v1468
  %v1477 = vsel %vm1473, %v1472, %v1466
  %1478 = vset.pattern.permute.xlu0 42
  %1479 = vperm.xlu0 %1478, %v422
  %v1480 = vpop.permute.xlu0 %1479
  %v1482 = vmul.f32 %v1480, %v1477
  %v1483 = vmul.f32 %v1480, %v1476
  %v1484 = vmul.f32 %v1480, %v1475
  %v1485 = vmul.f32 %v1480, %v1474
  %v1486 = vadd.f32 %v1386, %v1482
  %v1487 = vadd.f32 %v1387, %v1483
  %v1488 = vadd.f32 %v1388, %v1484
  %v1489 = vadd.f32 %v1389, %v1485
  %1490 = vrot.lane.b32.xlu0 %v280, 127
  %v1491 = vpop.permute.xlu0 %1490
  %1492 = vrot.lane.b32.xlu0 %v282, 127
  %v1493 = vpop.permute.xlu0 %1492
  %1494 = vrot.lane.b32.xlu0 %v351, 127
  %v1495 = vpop.permute.xlu0 %1494
  %1496 = vrot.lane.b32.xlu0 %v353, 127
  %v1497 = vpop.permute.xlu0 %1496
  %vm1498 = vcmp.lt.s32.totalorder %v447, 127
  %v1499 = vsel %vm1498, %v1495, %v1497
  %v1500 = vsel %vm1498, %v1493, %v1495
  %v1501 = vsel %vm1498, %v1491, %v1493
  %v1502 = vsel %vm1498, %v1497, %v1491
  %1503 = vset.pattern.permute.xlu0 43
  %1504 = vperm.xlu0 %1503, %v422
  %v1505 = vpop.permute.xlu0 %1504
  %v1507 = vmul.f32 %v1505, %v1502
  %v1508 = vmul.f32 %v1505, %v1501
  %v1509 = vmul.f32 %v1505, %v1500
  %v1510 = vmul.f32 %v1505, %v1499
  %v1511 = vadd.f32 %v1411, %v1507
  %v1512 = vadd.f32 %v1412, %v1508
  %v1513 = vadd.f32 %v1413, %v1509
  %v1514 = vadd.f32 %v1414, %v1510
  %1515 = vset.pattern.permute.xlu0 44
  %1516 = vperm.xlu0 %1515, %v422
  %v1517 = vpop.permute.xlu0 %1516
  %v1519 = vmul.f32 %v1517, %v353
  %v1520 = vmul.f32 %v1517, %v280
  %v1521 = vmul.f32 %v1517, %v282
  %v1522 = vmul.f32 %v1517, %v351
  %v1523 = vadd.f32 %v1436, %v1519
  %v1524 = vadd.f32 %v1437, %v1520
  %v1525 = vadd.f32 %v1438, %v1521
  %v1526 = vadd.f32 %v1439, %v1522
  %1527 = vset.pattern.permute.xlu0 45
  %1528 = vperm.xlu0 %1527, %v422
  %v1529 = vpop.permute.xlu0 %1528
  %v1531 = vmul.f32 %v1529, %v449
  %v1532 = vmul.f32 %v1529, %v452
  %v1533 = vmul.f32 %v1529, %v451
  %v1534 = vmul.f32 %v1529, %v450
  %v1535 = vadd.f32 %v1461, %v1531
  %v1536 = vadd.f32 %v1462, %v1532
  %v1537 = vadd.f32 %v1463, %v1533
  %v1538 = vadd.f32 %v1464, %v1534
  %1539 = vset.pattern.permute.xlu0 46
  %1540 = vperm.xlu0 %1539, %v422
  %v1541 = vpop.permute.xlu0 %1540
  %v1543 = vmul.f32 %v1541, %v474
  %v1544 = vmul.f32 %v1541, %v477
  %v1545 = vmul.f32 %v1541, %v476
  %v1546 = vmul.f32 %v1541, %v475
  %v1547 = vadd.f32 %v1486, %v1543
  %v1548 = vadd.f32 %v1487, %v1544
  %v1549 = vadd.f32 %v1488, %v1545
  %v1550 = vadd.f32 %v1489, %v1546
  %1551 = vset.pattern.permute.xlu0 47
  %1552 = vperm.xlu0 %1551, %v422
  %v1553 = vpop.permute.xlu0 %1552
  %v1555 = vmul.f32 %v1553, %v499
  %v1556 = vmul.f32 %v1553, %v502
  %v1557 = vmul.f32 %v1553, %v501
  %v1558 = vmul.f32 %v1553, %v500
  %v1559 = vadd.f32 %v1511, %v1555
  %v1560 = vadd.f32 %v1512, %v1556
  %v1561 = vadd.f32 %v1513, %v1557
  %v1562 = vadd.f32 %v1514, %v1558
  %1563 = vset.pattern.permute.xlu0 48
  %1564 = vperm.xlu0 %1563, %v422
  %v1565 = vpop.permute.xlu0 %1564
  %v1567 = vmul.f32 %v1565, %v524
  %v1568 = vmul.f32 %v1565, %v527
  %v1569 = vmul.f32 %v1565, %v526
  %v1570 = vmul.f32 %v1565, %v525
  %v1571 = vadd.f32 %v1523, %v1567
  %v1572 = vadd.f32 %v1524, %v1568
  %v1573 = vadd.f32 %v1525, %v1569
  %v1574 = vadd.f32 %v1526, %v1570
  %v1575 = vadd.f32 %v1571, %v1535
  %v1576 = vadd.f32 %v1572, %v1536
  %v1577 = vadd.f32 %v1573, %v1537
  %v1578 = vadd.f32 %v1574, %v1538
  %v1579 = vadd.f32 %v1547, %v1559
  %v1580 = vadd.f32 %v1548, %v1560
  %v1581 = vadd.f32 %v1549, %v1561
  %v1582 = vadd.f32 %v1550, %v1562
  %v1583 = vadd.f32 %v1575, %v1579
  %v1584 = vadd.f32 %v1576, %v1580
  %v1585 = vadd.f32 %v1577, %v1581
  %v1586 = vadd.f32 %v1578, %v1582
  %1587 = vset.pattern.permute.xlu0 49
  %1588 = vperm.xlu0 %1587, %v422
  %v1589 = vpop.permute.xlu0 %1588
  %v1591 = vmul.f32 %v1589, %v1583
  %v1592 = vmul.f32 %v1589, %v1584
  %v1593 = vmul.f32 %v1589, %v1585
  %v1594 = vmul.f32 %v1589, %v1586
  %v1595 = vadd.f32 %v1591, 0.0
  %v1596 = vadd.f32 %v1592, 0.0
  %v1597 = vadd.f32 %v1593, 0.0
  %v1598 = vadd.f32 %v1594, 0.0
  %1599 = vrot.lane.b32.xlu0 %v1583, 1
  %v1600 = vpop.permute.xlu0 %1599
  %1601 = vrot.lane.b32.xlu0 %v1584, 1
  %v1602 = vpop.permute.xlu0 %1601
  %1603 = vrot.lane.b32.xlu0 %v1585, 1
  %v1604 = vpop.permute.xlu0 %1603
  %1605 = vrot.lane.b32.xlu0 %v1586, 1
  %v1606 = vpop.permute.xlu0 %1605
  %v1607 = vsel %vm448, %v1604, %v1606
  %v1608 = vsel %vm448, %v1602, %v1604
  %v1609 = vsel %vm448, %v1600, %v1602
  %v1610 = vsel %vm448, %v1606, %v1600
  %1611 = vset.pattern.permute.xlu0 50
  %1612 = vperm.xlu0 %1611, %v422
  %v1613 = vpop.permute.xlu0 %1612
  %v1615 = vmul.f32 %v1613, %v1610
  %v1616 = vmul.f32 %v1613, %v1609
  %v1617 = vmul.f32 %v1613, %v1608
  %v1618 = vmul.f32 %v1613, %v1607
  %v1619 = vadd.f32 %v1615, 0.0
  %v1620 = vadd.f32 %v1616, 0.0
  %v1621 = vadd.f32 %v1617, 0.0
  %v1622 = vadd.f32 %v1618, 0.0
  %1623 = vrot.lane.b32.xlu0 %v1583, 2
  %v1624 = vpop.permute.xlu0 %1623
  %1625 = vrot.lane.b32.xlu0 %v1584, 2
  %v1626 = vpop.permute.xlu0 %1625
  %1627 = vrot.lane.b32.xlu0 %v1585, 2
  %v1628 = vpop.permute.xlu0 %1627
  %1629 = vrot.lane.b32.xlu0 %v1586, 2
  %v1630 = vpop.permute.xlu0 %1629
  %v1631 = vsel %vm473, %v1628, %v1630
  %v1632 = vsel %vm473, %v1626, %v1628
  %v1633 = vsel %vm473, %v1624, %v1626
  %v1634 = vsel %vm473, %v1630, %v1624
  %1635 = vset.pattern.permute.xlu0 51
  %1636 = vperm.xlu0 %1635, %v422
  %v1637 = vpop.permute.xlu0 %1636
  %v1639 = vmul.f32 %v1637, %v1634
  %v1640 = vmul.f32 %v1637, %v1633
  %v1641 = vmul.f32 %v1637, %v1632
  %v1642 = vmul.f32 %v1637, %v1631
  %v1643 = vadd.f32 %v1639, 0.0
  %v1644 = vadd.f32 %v1640, 0.0
  %v1645 = vadd.f32 %v1641, 0.0
  %v1646 = vadd.f32 %v1642, 0.0
  %1647 = vrot.lane.b32.xlu0 %v1583, 3
  %v1648 = vpop.permute.xlu0 %1647
  %1649 = vrot.lane.b32.xlu0 %v1584, 3
  %v1650 = vpop.permute.xlu0 %1649
  %1651 = vrot.lane.b32.xlu0 %v1585, 3
  %v1652 = vpop.permute.xlu0 %1651
  %1653 = vrot.lane.b32.xlu0 %v1586, 3
  %v1654 = vpop.permute.xlu0 %1653
  %v1655 = vsel %vm498, %v1652, %v1654
  %v1656 = vsel %vm498, %v1650, %v1652
  %v1657 = vsel %vm498, %v1648, %v1650
  %v1658 = vsel %vm498, %v1654, %v1648
  %1659 = vset.pattern.permute.xlu0 52
  %1660 = vperm.xlu0 %1659, %v422
  %v1661 = vpop.permute.xlu0 %1660
  %v1663 = vmul.f32 %v1661, %v1658
  %v1664 = vmul.f32 %v1661, %v1657
  %v1665 = vmul.f32 %v1661, %v1656
  %v1666 = vmul.f32 %v1661, %v1655
  %v1667 = vadd.f32 %v1663, 0.0
  %v1668 = vadd.f32 %v1664, 0.0
  %v1669 = vadd.f32 %v1665, 0.0
  %v1670 = vadd.f32 %v1666, 0.0
  %1671 = vrot.lane.b32.xlu0 %v1583, 4
  %v1672 = vpop.permute.xlu0 %1671
  %1673 = vrot.lane.b32.xlu0 %v1584, 4
  %v1674 = vpop.permute.xlu0 %1673
  %1675 = vrot.lane.b32.xlu0 %v1585, 4
  %v1676 = vpop.permute.xlu0 %1675
  %1677 = vrot.lane.b32.xlu0 %v1586, 4
  %v1678 = vpop.permute.xlu0 %1677
  %v1679 = vsel %vm523, %v1676, %v1678
  %v1680 = vsel %vm523, %v1674, %v1676
  %v1681 = vsel %vm523, %v1672, %v1674
  %v1682 = vsel %vm523, %v1678, %v1672
  %1683 = vset.pattern.permute.xlu0 53
  %1684 = vperm.xlu0 %1683, %v422
  %v1685 = vpop.permute.xlu0 %1684
  %v1687 = vmul.f32 %v1685, %v1682
  %v1688 = vmul.f32 %v1685, %v1681
  %v1689 = vmul.f32 %v1685, %v1680
  %v1690 = vmul.f32 %v1685, %v1679
  %v1691 = vadd.f32 %v1595, %v1687
  %v1692 = vadd.f32 %v1596, %v1688
  %v1693 = vadd.f32 %v1597, %v1689
  %v1694 = vadd.f32 %v1598, %v1690
  %1695 = vrot.lane.b32.xlu0 %v1583, 21
  %v1696 = vpop.permute.xlu0 %1695
  %1697 = vrot.lane.b32.xlu0 %v1584, 21
  %v1698 = vpop.permute.xlu0 %1697
  %1699 = vrot.lane.b32.xlu0 %v1585, 21
  %v1700 = vpop.permute.xlu0 %1699
  %1701 = vrot.lane.b32.xlu0 %v1586, 21
  %v1702 = vpop.permute.xlu0 %1701
  %v1703 = vsel %vm598, %v1700, %v1702
  %v1704 = vsel %vm598, %v1698, %v1700
  %v1705 = vsel %vm598, %v1696, %v1698
  %v1706 = vsel %vm598, %v1702, %v1696
  %1707 = vset.pattern.permute.xlu0 54
  %1708 = vperm.xlu0 %1707, %v422
  %v1709 = vpop.permute.xlu0 %1708
  %v1711 = vmul.f32 %v1709, %v1706
  %v1712 = vmul.f32 %v1709, %v1705
  %v1713 = vmul.f32 %v1709, %v1704
  %v1714 = vmul.f32 %v1709, %v1703
  %v1715 = vadd.f32 %v1619, %v1711
  %v1716 = vadd.f32 %v1620, %v1712
  %v1717 = vadd.f32 %v1621, %v1713
  %v1718 = vadd.f32 %v1622, %v1714
  %1719 = vrot.lane.b32.xlu0 %v1583, 22
  %v1720 = vpop.permute.xlu0 %1719
  %1721 = vrot.lane.b32.xlu0 %v1584, 22
  %v1722 = vpop.permute.xlu0 %1721
  %1723 = vrot.lane.b32.xlu0 %v1585, 22
  %v1724 = vpop.permute.xlu0 %1723
  %1725 = vrot.lane.b32.xlu0 %v1586, 22
  %v1726 = vpop.permute.xlu0 %1725
  %v1727 = vsel %vm623, %v1724, %v1726
  %v1728 = vsel %vm623, %v1722, %v1724
  %v1729 = vsel %vm623, %v1720, %v1722
  %v1730 = vsel %vm623, %v1726, %v1720
  %1731 = vset.pattern.permute.xlu0 55
  %1732 = vperm.xlu0 %1731, %v422
  %v1733 = vpop.permute.xlu0 %1732
  %v1735 = vmul.f32 %v1733, %v1730
  %v1736 = vmul.f32 %v1733, %v1729
  %v1737 = vmul.f32 %v1733, %v1728
  %v1738 = vmul.f32 %v1733, %v1727
  %v1739 = vadd.f32 %v1643, %v1735
  %v1740 = vadd.f32 %v1644, %v1736
  %v1741 = vadd.f32 %v1645, %v1737
  %v1742 = vadd.f32 %v1646, %v1738
  %1743 = vrot.lane.b32.xlu0 %v1583, 23
  %v1744 = vpop.permute.xlu0 %1743
  %1745 = vrot.lane.b32.xlu0 %v1584, 23
  %v1746 = vpop.permute.xlu0 %1745
  %1747 = vrot.lane.b32.xlu0 %v1585, 23
  %v1748 = vpop.permute.xlu0 %1747
  %1749 = vrot.lane.b32.xlu0 %v1586, 23
  %v1750 = vpop.permute.xlu0 %1749
  %v1751 = vsel %vm648, %v1748, %v1750
  %v1752 = vsel %vm648, %v1746, %v1748
  %v1753 = vsel %vm648, %v1744, %v1746
  %v1754 = vsel %vm648, %v1750, %v1744
  %1755 = vset.pattern.permute.xlu0 56
  %1756 = vperm.xlu0 %1755, %v422
  %v1757 = vpop.permute.xlu0 %1756
  %v1759 = vmul.f32 %v1757, %v1754
  %v1760 = vmul.f32 %v1757, %v1753
  %v1761 = vmul.f32 %v1757, %v1752
  %v1762 = vmul.f32 %v1757, %v1751
  %v1763 = vadd.f32 %v1667, %v1759
  %v1764 = vadd.f32 %v1668, %v1760
  %v1765 = vadd.f32 %v1669, %v1761
  %v1766 = vadd.f32 %v1670, %v1762
  %1767 = vrot.lane.b32.xlu0 %v1583, 24
  %v1768 = vpop.permute.xlu0 %1767
  %1769 = vrot.lane.b32.xlu0 %v1584, 24
  %v1770 = vpop.permute.xlu0 %1769
  %1771 = vrot.lane.b32.xlu0 %v1585, 24
  %v1772 = vpop.permute.xlu0 %1771
  %1773 = vrot.lane.b32.xlu0 %v1586, 24
  %v1774 = vpop.permute.xlu0 %1773
  %v1775 = vsel %vm673, %v1772, %v1774
  %v1776 = vsel %vm673, %v1770, %v1772
  %v1777 = vsel %vm673, %v1768, %v1770
  %v1778 = vsel %vm673, %v1774, %v1768
  %1779 = vset.pattern.permute.xlu0 57
  %1780 = vperm.xlu0 %1779, %v422
  %v1781 = vpop.permute.xlu0 %1780
  %v1783 = vmul.f32 %v1781, %v1778
  %v1784 = vmul.f32 %v1781, %v1777
  %v1785 = vmul.f32 %v1781, %v1776
  %v1786 = vmul.f32 %v1781, %v1775
  %v1787 = vadd.f32 %v1691, %v1783
  %v1788 = vadd.f32 %v1692, %v1784
  %v1789 = vadd.f32 %v1693, %v1785
  %v1790 = vadd.f32 %v1694, %v1786
  %1791 = vrot.lane.b32.xlu0 %v1583, 25
  %v1792 = vpop.permute.xlu0 %1791
  %1793 = vrot.lane.b32.xlu0 %v1584, 25
  %v1794 = vpop.permute.xlu0 %1793
  %1795 = vrot.lane.b32.xlu0 %v1585, 25
  %v1796 = vpop.permute.xlu0 %1795
  %1797 = vrot.lane.b32.xlu0 %v1586, 25
  %v1798 = vpop.permute.xlu0 %1797
  %v1799 = vsel %vm698, %v1796, %v1798
  %v1800 = vsel %vm698, %v1794, %v1796
  %v1801 = vsel %vm698, %v1792, %v1794
  %v1802 = vsel %vm698, %v1798, %v1792
  %1803 = vset.pattern.permute.xlu0 58
  %1804 = vperm.xlu0 %1803, %v422
  %v1805 = vpop.permute.xlu0 %1804
  %v1807 = vmul.f32 %v1805, %v1802
  %v1808 = vmul.f32 %v1805, %v1801
  %v1809 = vmul.f32 %v1805, %v1800
  %v1810 = vmul.f32 %v1805, %v1799
  %v1811 = vadd.f32 %v1715, %v1807
  %v1812 = vadd.f32 %v1716, %v1808
  %v1813 = vadd.f32 %v1717, %v1809
  %v1814 = vadd.f32 %v1718, %v1810
  %1815 = vrot.lane.b32.xlu0 %v1583, 42
  %v1816 = vpop.permute.xlu0 %1815
  %1817 = vrot.lane.b32.xlu0 %v1584, 42
  %v1818 = vpop.permute.xlu0 %1817
  %1819 = vrot.lane.b32.xlu0 %v1585, 42
  %v1820 = vpop.permute.xlu0 %1819
  %1821 = vrot.lane.b32.xlu0 %v1586, 42
  %v1822 = vpop.permute.xlu0 %1821
  %v1823 = vsel %vm773, %v1820, %v1822
  %v1824 = vsel %vm773, %v1818, %v1820
  %v1825 = vsel %vm773, %v1816, %v1818
  %v1826 = vsel %vm773, %v1822, %v1816
  %1827 = vset.pattern.permute.xlu0 59
  %1828 = vperm.xlu0 %1827, %v422
  %v1829 = vpop.permute.xlu0 %1828
  %v1831 = vmul.f32 %v1829, %v1826
  %v1832 = vmul.f32 %v1829, %v1825
  %v1833 = vmul.f32 %v1829, %v1824
  %v1834 = vmul.f32 %v1829, %v1823
  %v1835 = vadd.f32 %v1739, %v1831
  %v1836 = vadd.f32 %v1740, %v1832
  %v1837 = vadd.f32 %v1741, %v1833
  %v1838 = vadd.f32 %v1742, %v1834
  %1839 = vrot.lane.b32.xlu0 %v1583, 43
  %v1840 = vpop.permute.xlu0 %1839
  %1841 = vrot.lane.b32.xlu0 %v1584, 43
  %v1842 = vpop.permute.xlu0 %1841
  %1843 = vrot.lane.b32.xlu0 %v1585, 43
  %v1844 = vpop.permute.xlu0 %1843
  %1845 = vrot.lane.b32.xlu0 %v1586, 43
  %v1846 = vpop.permute.xlu0 %1845
  %v1847 = vsel %vm798, %v1844, %v1846
  %v1848 = vsel %vm798, %v1842, %v1844
  %v1849 = vsel %vm798, %v1840, %v1842
  %v1850 = vsel %vm798, %v1846, %v1840
  %1851 = vset.pattern.permute.xlu0 60
  %1852 = vperm.xlu0 %1851, %v422
  %v1853 = vpop.permute.xlu0 %1852
  %v1855 = vmul.f32 %v1853, %v1850
  %v1856 = vmul.f32 %v1853, %v1849
  %v1857 = vmul.f32 %v1853, %v1848
  %v1858 = vmul.f32 %v1853, %v1847
  %v1859 = vadd.f32 %v1763, %v1855
  %v1860 = vadd.f32 %v1764, %v1856
  %v1861 = vadd.f32 %v1765, %v1857
  %v1862 = vadd.f32 %v1766, %v1858
  %1863 = vrot.lane.b32.xlu0 %v1583, 44
  %v1864 = vpop.permute.xlu0 %1863
  %1865 = vrot.lane.b32.xlu0 %v1584, 44
  %v1866 = vpop.permute.xlu0 %1865
  %1867 = vrot.lane.b32.xlu0 %v1585, 44
  %v1868 = vpop.permute.xlu0 %1867
  %1869 = vrot.lane.b32.xlu0 %v1586, 44
  %v1870 = vpop.permute.xlu0 %1869
  %v1871 = vsel %vm823, %v1868, %v1870
  %v1872 = vsel %vm823, %v1866, %v1868
  %v1873 = vsel %vm823, %v1864, %v1866
  %v1874 = vsel %vm823, %v1870, %v1864
  %1875 = vset.pattern.permute.xlu0 61
  %1876 = vperm.xlu0 %1875, %v422
  %v1877 = vpop.permute.xlu0 %1876
  %v1879 = vmul.f32 %v1877, %v1874
  %v1880 = vmul.f32 %v1877, %v1873
  %v1881 = vmul.f32 %v1877, %v1872
  %v1882 = vmul.f32 %v1877, %v1871
  %v1883 = vadd.f32 %v1787, %v1879
  %v1884 = vadd.f32 %v1788, %v1880
  %v1885 = vadd.f32 %v1789, %v1881
  %v1886 = vadd.f32 %v1790, %v1882
  %1887 = vrot.lane.b32.xlu0 %v1583, 45
  %v1888 = vpop.permute.xlu0 %1887
  %1889 = vrot.lane.b32.xlu0 %v1584, 45
  %v1890 = vpop.permute.xlu0 %1889
  %1891 = vrot.lane.b32.xlu0 %v1585, 45
  %v1892 = vpop.permute.xlu0 %1891
  %1893 = vrot.lane.b32.xlu0 %v1586, 45
  %v1894 = vpop.permute.xlu0 %1893
  %v1895 = vsel %vm848, %v1892, %v1894
  %v1896 = vsel %vm848, %v1890, %v1892
  %v1897 = vsel %vm848, %v1888, %v1890
  %v1898 = vsel %vm848, %v1894, %v1888
  %1899 = vset.pattern.permute.xlu0 62
  %1900 = vperm.xlu0 %1899, %v422
  %v1901 = vpop.permute.xlu0 %1900
  %v1903 = vmul.f32 %v1901, %v1898
  %v1904 = vmul.f32 %v1901, %v1897
  %v1905 = vmul.f32 %v1901, %v1896
  %v1906 = vmul.f32 %v1901, %v1895
  %v1907 = vadd.f32 %v1811, %v1903
  %v1908 = vadd.f32 %v1812, %v1904
  %v1909 = vadd.f32 %v1813, %v1905
  %v1910 = vadd.f32 %v1814, %v1906
  %1911 = vrot.lane.b32.xlu0 %v1583, 46
  %v1912 = vpop.permute.xlu0 %1911
  %1913 = vrot.lane.b32.xlu0 %v1584, 46
  %v1914 = vpop.permute.xlu0 %1913
  %1915 = vrot.lane.b32.xlu0 %v1585, 46
  %v1916 = vpop.permute.xlu0 %1915
  %1917 = vrot.lane.b32.xlu0 %v1586, 46
  %v1918 = vpop.permute.xlu0 %1917
  %v1919 = vsel %vm873, %v1916, %v1918
  %v1920 = vsel %vm873, %v1914, %v1916
  %v1921 = vsel %vm873, %v1912, %v1914
  %v1922 = vsel %vm873, %v1918, %v1912
  %1923 = vset.pattern.permute.xlu0 63
  %1924 = vperm.xlu0 %1923, %v422
  %v1925 = vpop.permute.xlu0 %1924
  %v1927 = vmul.f32 %v1925, %v1922
  %v1928 = vmul.f32 %v1925, %v1921
  %v1929 = vmul.f32 %v1925, %v1920
  %v1930 = vmul.f32 %v1925, %v1919
  %v1931 = vadd.f32 %v1835, %v1927
  %v1932 = vadd.f32 %v1836, %v1928
  %v1933 = vadd.f32 %v1837, %v1929
  %v1934 = vadd.f32 %v1838, %v1930
  %1935 = vrot.lane.b32.xlu0 %v1583, 63
  %v1936 = vpop.permute.xlu0 %1935
  %1937 = vrot.lane.b32.xlu0 %v1584, 63
  %v1938 = vpop.permute.xlu0 %1937
  %1939 = vrot.lane.b32.xlu0 %v1585, 63
  %v1940 = vpop.permute.xlu0 %1939
  %1941 = vrot.lane.b32.xlu0 %v1586, 63
  %v1942 = vpop.permute.xlu0 %1941
  %v1943 = vsel %vm948, %v1940, %v1942
  %v1944 = vsel %vm948, %v1938, %v1940
  %v1945 = vsel %vm948, %v1936, %v1938
  %v1946 = vsel %vm948, %v1942, %v1936
  %1947 = vset.pattern.permute.xlu0 64
  %1948 = vperm.xlu0 %1947, %v422
  %v1949 = vpop.permute.xlu0 %1948
  %v1951 = vmul.f32 %v1949, %v1946
  %v1952 = vmul.f32 %v1949, %v1945
  %v1953 = vmul.f32 %v1949, %v1944
  %v1954 = vmul.f32 %v1949, %v1943
  %v1955 = vadd.f32 %v1859, %v1951
  %v1956 = vadd.f32 %v1860, %v1952
  %v1957 = vadd.f32 %v1861, %v1953
  %v1958 = vadd.f32 %v1862, %v1954
  %1959 = vrot.lane.b32.xlu0 %v1583, 64
  %v1960 = vpop.permute.xlu0 %1959
  %1961 = vrot.lane.b32.xlu0 %v1584, 64
  %v1962 = vpop.permute.xlu0 %1961
  %1963 = vrot.lane.b32.xlu0 %v1585, 64
  %v1964 = vpop.permute.xlu0 %1963
  %1965 = vrot.lane.b32.xlu0 %v1586, 64
  %v1966 = vpop.permute.xlu0 %1965
  %v1967 = vsel %vm973, %v1964, %v1966
  %v1968 = vsel %vm973, %v1962, %v1964
  %v1969 = vsel %vm973, %v1960, %v1962
  %v1970 = vsel %vm973, %v1966, %v1960
  %1971 = vset.pattern.permute.xlu0 65
  %1972 = vperm.xlu0 %1971, %v422
  %v1973 = vpop.permute.xlu0 %1972
  %v1975 = vmul.f32 %v1973, %v1970
  %v1976 = vmul.f32 %v1973, %v1969
  %v1977 = vmul.f32 %v1973, %v1968
  %v1978 = vmul.f32 %v1973, %v1967
  %v1979 = vadd.f32 %v1883, %v1975
  %v1980 = vadd.f32 %v1884, %v1976
  %v1981 = vadd.f32 %v1885, %v1977
  %v1982 = vadd.f32 %v1886, %v1978
  %1983 = vrot.lane.b32.xlu0 %v1583, 65
  %v1984 = vpop.permute.xlu0 %1983
  %1985 = vrot.lane.b32.xlu0 %v1584, 65
  %v1986 = vpop.permute.xlu0 %1985
  %1987 = vrot.lane.b32.xlu0 %v1585, 65
  %v1988 = vpop.permute.xlu0 %1987
  %1989 = vrot.lane.b32.xlu0 %v1586, 65
  %v1990 = vpop.permute.xlu0 %1989
  %v1991 = vsel %vm998, %v1988, %v1990
  %v1992 = vsel %vm998, %v1986, %v1988
  %v1993 = vsel %vm998, %v1984, %v1986
  %v1994 = vsel %vm998, %v1990, %v1984
  %1995 = vset.pattern.permute.xlu0 66
  %1996 = vperm.xlu0 %1995, %v422
  %v1997 = vpop.permute.xlu0 %1996
  %v1999 = vmul.f32 %v1997, %v1994
  %v2000 = vmul.f32 %v1997, %v1993
  %v2001 = vmul.f32 %v1997, %v1992
  %v2002 = vmul.f32 %v1997, %v1991
  %v2003 = vadd.f32 %v1907, %v1999
  %v2004 = vadd.f32 %v1908, %v2000
  %v2005 = vadd.f32 %v1909, %v2001
  %v2006 = vadd.f32 %v1910, %v2002
  %2007 = vrot.lane.b32.xlu0 %v1583, 66
  %v2008 = vpop.permute.xlu0 %2007
  %2009 = vrot.lane.b32.xlu0 %v1584, 66
  %v2010 = vpop.permute.xlu0 %2009
  %2011 = vrot.lane.b32.xlu0 %v1585, 66
  %v2012 = vpop.permute.xlu0 %2011
  %2013 = vrot.lane.b32.xlu0 %v1586, 66
  %v2014 = vpop.permute.xlu0 %2013
  %v2015 = vsel %vm1023, %v2012, %v2014
  %v2016 = vsel %vm1023, %v2010, %v2012
  %v2017 = vsel %vm1023, %v2008, %v2010
  %v2018 = vsel %vm1023, %v2014, %v2008
  %2019 = vset.pattern.permute.xlu0 67
  %2020 = vperm.xlu0 %2019, %v422
  %v2021 = vpop.permute.xlu0 %2020
  %v2023 = vmul.f32 %v2021, %v2018
  %v2024 = vmul.f32 %v2021, %v2017
  %v2025 = vmul.f32 %v2021, %v2016
  %v2026 = vmul.f32 %v2021, %v2015
  %v2027 = vadd.f32 %v1931, %v2023
  %v2028 = vadd.f32 %v1932, %v2024
  %v2029 = vadd.f32 %v1933, %v2025
  %v2030 = vadd.f32 %v1934, %v2026
  %2031 = vrot.lane.b32.xlu0 %v1583, 67
  %v2032 = vpop.permute.xlu0 %2031
  %2033 = vrot.lane.b32.xlu0 %v1584, 67
  %v2034 = vpop.permute.xlu0 %2033
  %2035 = vrot.lane.b32.xlu0 %v1585, 67
  %v2036 = vpop.permute.xlu0 %2035
  %2037 = vrot.lane.b32.xlu0 %v1586, 67
  %v2038 = vpop.permute.xlu0 %2037
  %v2039 = vsel %vm1048, %v2036, %v2038
  %v2040 = vsel %vm1048, %v2034, %v2036
  %v2041 = vsel %vm1048, %v2032, %v2034
  %v2042 = vsel %vm1048, %v2038, %v2032
  %2043 = vset.pattern.permute.xlu0 68
  %2044 = vperm.xlu0 %2043, %v422
  %v2045 = vpop.permute.xlu0 %2044
  %v2047 = vmul.f32 %v2045, %v2042
  %v2048 = vmul.f32 %v2045, %v2041
  %v2049 = vmul.f32 %v2045, %v2040
  %v2050 = vmul.f32 %v2045, %v2039
  %v2051 = vadd.f32 %v1955, %v2047
  %v2052 = vadd.f32 %v1956, %v2048
  %v2053 = vadd.f32 %v1957, %v2049
  %v2054 = vadd.f32 %v1958, %v2050
  %2055 = vrot.lane.b32.xlu0 %v1583, 84
  %v2056 = vpop.permute.xlu0 %2055
  %2057 = vrot.lane.b32.xlu0 %v1584, 84
  %v2058 = vpop.permute.xlu0 %2057
  %2059 = vrot.lane.b32.xlu0 %v1585, 84
  %v2060 = vpop.permute.xlu0 %2059
  %2061 = vrot.lane.b32.xlu0 %v1586, 84
  %v2062 = vpop.permute.xlu0 %2061
  %v2063 = vsel %vm1123, %v2060, %v2062
  %v2064 = vsel %vm1123, %v2058, %v2060
  %v2065 = vsel %vm1123, %v2056, %v2058
  %v2066 = vsel %vm1123, %v2062, %v2056
  %2067 = vset.pattern.permute.xlu0 69
  %2068 = vperm.xlu0 %2067, %v422
  %v2069 = vpop.permute.xlu0 %2068
  %v2071 = vmul.f32 %v2069, %v2066
  %v2072 = vmul.f32 %v2069, %v2065
  %v2073 = vmul.f32 %v2069, %v2064
  %v2074 = vmul.f32 %v2069, %v2063
  %v2075 = vadd.f32 %v1979, %v2071
  %v2076 = vadd.f32 %v1980, %v2072
  %v2077 = vadd.f32 %v1981, %v2073
  %v2078 = vadd.f32 %v1982, %v2074
  %2079 = vrot.lane.b32.xlu0 %v1583, 85
  %v2080 = vpop.permute.xlu0 %2079
  %2081 = vrot.lane.b32.xlu0 %v1584, 85
  %v2082 = vpop.permute.xlu0 %2081
  %2083 = vrot.lane.b32.xlu0 %v1585, 85
  %v2084 = vpop.permute.xlu0 %2083
  %2085 = vrot.lane.b32.xlu0 %v1586, 85
  %v2086 = vpop.permute.xlu0 %2085
  %v2087 = vsel %vm1148, %v2084, %v2086
  %v2088 = vsel %vm1148, %v2082, %v2084
  %v2089 = vsel %vm1148, %v2080, %v2082
  %v2090 = vsel %vm1148, %v2086, %v2080
  %2091 = vset.pattern.permute.xlu0 70
  %2092 = vperm.xlu0 %2091, %v422
  %v2093 = vpop.permute.xlu0 %2092
  %v2095 = vmul.f32 %v2093, %v2090
  %v2096 = vmul.f32 %v2093, %v2089
  %v2097 = vmul.f32 %v2093, %v2088
  %v2098 = vmul.f32 %v2093, %v2087
  %v2099 = vadd.f32 %v2003, %v2095
  %v2100 = vadd.f32 %v2004, %v2096
  %v2101 = vadd.f32 %v2005, %v2097
  %v2102 = vadd.f32 %v2006, %v2098
  %2103 = vrot.lane.b32.xlu0 %v1583, 86
  %v2104 = vpop.permute.xlu0 %2103
  %2105 = vrot.lane.b32.xlu0 %v1584, 86
  %v2106 = vpop.permute.xlu0 %2105
  %2107 = vrot.lane.b32.xlu0 %v1585, 86
  %v2108 = vpop.permute.xlu0 %2107
  %2109 = vrot.lane.b32.xlu0 %v1586, 86
  %v2110 = vpop.permute.xlu0 %2109
  %v2111 = vsel %vm1173, %v2108, %v2110
  %v2112 = vsel %vm1173, %v2106, %v2108
  %v2113 = vsel %vm1173, %v2104, %v2106
  %v2114 = vsel %vm1173, %v2110, %v2104
  %2115 = vset.pattern.permute.xlu0 71
  %2116 = vperm.xlu0 %2115, %v422
  %v2117 = vpop.permute.xlu0 %2116
  %v2119 = vmul.f32 %v2117, %v2114
  %v2120 = vmul.f32 %v2117, %v2113
  %v2121 = vmul.f32 %v2117, %v2112
  %v2122 = vmul.f32 %v2117, %v2111
  %v2123 = vadd.f32 %v2027, %v2119
  %v2124 = vadd.f32 %v2028, %v2120
  %v2125 = vadd.f32 %v2029, %v2121
  %v2126 = vadd.f32 %v2030, %v2122
  %2127 = vrot.lane.b32.xlu0 %v1583, 87
  %v2128 = vpop.permute.xlu0 %2127
  %2129 = vrot.lane.b32.xlu0 %v1584, 87
  %v2130 = vpop.permute.xlu0 %2129
  %2131 = vrot.lane.b32.xlu0 %v1585, 87
  %v2132 = vpop.permute.xlu0 %2131
  %2133 = vrot.lane.b32.xlu0 %v1586, 87
  %v2134 = vpop.permute.xlu0 %2133
  %v2135 = vsel %vm1198, %v2132, %v2134
  %v2136 = vsel %vm1198, %v2130, %v2132
  %v2137 = vsel %vm1198, %v2128, %v2130
  %v2138 = vsel %vm1198, %v2134, %v2128
  %2139 = vset.pattern.permute.xlu0 72
  %2140 = vperm.xlu0 %2139, %v422
  %v2141 = vpop.permute.xlu0 %2140
  %v2143 = vmul.f32 %v2141, %v2138
  %v2144 = vmul.f32 %v2141, %v2137
  %v2145 = vmul.f32 %v2141, %v2136
  %v2146 = vmul.f32 %v2141, %v2135
  %v2147 = vadd.f32 %v2051, %v2143
  %v2148 = vadd.f32 %v2052, %v2144
  %v2149 = vadd.f32 %v2053, %v2145
  %v2150 = vadd.f32 %v2054, %v2146
  %2151 = vrot.lane.b32.xlu0 %v1583, 88
  %v2152 = vpop.permute.xlu0 %2151
  %2153 = vrot.lane.b32.xlu0 %v1584, 88
  %v2154 = vpop.permute.xlu0 %2153
  %2155 = vrot.lane.b32.xlu0 %v1585, 88
  %v2156 = vpop.permute.xlu0 %2155
  %2157 = vrot.lane.b32.xlu0 %v1586, 88
  %v2158 = vpop.permute.xlu0 %2157
  %v2159 = vsel %vm1223, %v2156, %v2158
  %v2160 = vsel %vm1223, %v2154, %v2156
  %v2161 = vsel %vm1223, %v2152, %v2154
  %v2162 = vsel %vm1223, %v2158, %v2152
  %2163 = vset.pattern.permute.xlu0 73
  %2164 = vperm.xlu0 %2163, %v422
  %v2165 = vpop.permute.xlu0 %2164
  %v2167 = vmul.f32 %v2165, %v2162
  %v2168 = vmul.f32 %v2165, %v2161
  %v2169 = vmul.f32 %v2165, %v2160
  %v2170 = vmul.f32 %v2165, %v2159
  %v2171 = vadd.f32 %v2075, %v2167
  %v2172 = vadd.f32 %v2076, %v2168
  %v2173 = vadd.f32 %v2077, %v2169
  %v2174 = vadd.f32 %v2078, %v2170
  %v2175 = vadd.f32 %v2171, %v2099
  %v2176 = vadd.f32 %v2172, %v2100
  %v2177 = vadd.f32 %v2173, %v2101
  %v2178 = vadd.f32 %v2174, %v2102
  %v2179 = vadd.f32 %v2123, %v2147
  %v2180 = vadd.f32 %v2124, %v2148
  %v2181 = vadd.f32 %v2125, %v2149
  %v2182 = vadd.f32 %v2126, %v2150
  %v2183 = vadd.f32 %v2175, %v2179
  %v2184 = vadd.f32 %v2176, %v2180
  %v2185 = vadd.f32 %v2177, %v2181
  %v2186 = vadd.f32 %v2178, %v2182
  %2187 = vset.pattern.permute.xlu0 74
  %2188 = vperm.xlu0 %2187, %v422
  %v2189 = vpop.permute.xlu0 %2188
  %v2191 = vmul.f32 %v2183, %v2189
  %v2192 = vmul.f32 %v2184, %v2189
  %v2193 = vmul.f32 %v2185, %v2189
  %v2194 = vmul.f32 %v2186, %v2189
  %vm2195 = vcmask 1041408
  %v2196 = vsel %vm2195, %v2191, 0.0
  %v2197 = vsel %vm2195, %v2192, 0.0
  %v2198 = vadd.f32 %v2196, %v2197
  %v2199 = vsel %vm2195, %v2193, 0.0
  %v2200 = vadd.f32 %v2198, %v2199
  %v2201 = vsel %vm2195, %v2194, 0.0
  %v2202 = vadd.f32 %v2200, %v2201
  %2203 = vadd.xlane.f32.xlu0 %v2202
  %v2204 = vpop.xlane.xlu0 %2203
  %v2205 = vrcp.pop %v2204
  %v2206 = vmul.f32 %v2204, %v2205
  %v2207 = vsub.f32 2.0, %v2206
  %v2208 = vmul.f32 %v2205, %v2207
  %v2209 = vmul.f32 %v2191, %v2208
  %v2210 = vmul.f32 %v2192, %v2208
  %v2211 = vmul.f32 %v2193, %v2208
  %v2212 = vmul.f32 %v2194, %v2208
  %v2217 = vcombine.low %v2209, %v2210
  %v2218 = vcombine.low %v2211, %v2212
  %v2220 = vunpack.c.l.s4 1983009808
  %v2221 = vunpack.c.0.s8 %v2220
  %v2222 = vlaneseq
  %v2223 = vshrl.u32 %v2222, 7
  %v2224 = vsub.s32 %v2221, %v2223
  %v2225 = vrot.slane %v2217, %v2224
  %v2227 = vunpack.c.l.s4 1983009808
  %v2228 = vunpack.c.0.s8 %v2227
  %v2229 = vlaneseq
  %v2230 = vshrl.u32 %v2229, 7
  %v2231 = vsub.s32 %v2228, %v2230
  %v2232 = vrot.slane %v2218, %v2231
  %v2233 = vcombine.low %v2225, %v2232
  %2235 = vst [vmem:[%s5] sm:$0xff] %v2233
  // Predicated region
  $region22: #{kernel_forward.1} parent=0 // pred_check
    _
  $region23: #{kernel_forward.1} parent=0 // pred_check_branch
    %2237 = sbr.rel (0) target = $region25
  $region24: #{kernel_forward.1} parent=0 // pred_region
    _
  $region25: #{kernel_forward.1} parent=0 // pred_fallthru
    _
  // Predicated region
  $region26: #{kernel_forward.1} parent=0 // pred_check
    _
  $region27: #{kernel_forward.1} parent=0 // pred_check_branch
    %2239 = sbr.rel (0) target = $region29
  $region28: #{kernel_forward.1} parent=0 // pred_region
    _
  $region29: #{kernel_forward.1} parent=0 // pred_fallthru
    _

</llo_original>
